<compile_context>
chip_gen: v5e
topology: v5e:2x2
jax: 0.10.0
libtpu: 0.0.40
codegen_flags: <defaults>
</compile_context>

<pallas_src>
import jax
import jax.numpy as jnp
from jax import lax
from jax.experimental import pallas as pl
from jax.experimental.pallas import tpu as pltpu


def _round_up(x, m):
    return (x + m - 1) // m * m


# ----------------------------------------------------------------------------
# Kernel 1: tiled conv (as im2col matmul) + folded BatchNorm + ReLU
# ----------------------------------------------------------------------------
def conv_bn_relu_kernel(p_ref, w_ref, scale_ref, shift_ref, o_ref, acc_ref):
    # p_ref:     (tm, tk) bf16 im2col patches
    # w_ref:     (tk, tn) bf16 conv weight (flattened)
    # scale_ref: (1, tn)  f32 folded BN scale  (gamma / sqrt(var + eps))
    # shift_ref: (1, tn)  f32 folded BN shift  (beta - mean * scale)
    # acc_ref:   (tm, tn) f32 VMEM accumulator (persists across the k grid axis)
    @pl.when(pl.program_id(2) == 0)
    def _():
        acc_ref[...] = jnp.zeros_like(acc_ref)

    acc_ref[...] += jnp.dot(p_ref[...], w_ref[...],
                            preferred_element_type=jnp.float32)

    @pl.when(pl.program_id(2) == pl.num_programs(2) - 1)
    def _():
        acc = acc_ref[...] * scale_ref[...] + shift_ref[...]   # epilogue in f32
        o_ref[...] = jnp.maximum(acc, 0.0).astype(o_ref.dtype)


def im2col(x, kh, kw, stride, pad):
    """x: (N, C, H, W) NCHW -> patches (N*Ho*Wo, C*kh*kw), plus (Ho, Wo). Keeps x's dtype."""
    n, c, h, w = x.shape
    xp = jnp.pad(x, ((0, 0), (0, 0), (pad, pad), (pad, pad)))
    ho = (h + 2 * pad - kh) // stride + 1
    wo = (w + 2 * pad - kw) // stride + 1
    cols = []
    for i in range(kh):
        for j in range(kw):
            cols.append(xp[:, :, i:i + stride * ho:stride, j:j + stride * wo:stride])
    # (kh*kw, N, C, Ho, Wo) -> (N, Ho, Wo, C, kh*kw) -> (N*Ho*Wo, C*kh*kw)
    cols = jnp.stack(cols, axis=0).transpose(1, 3, 4, 2, 0).reshape(n * ho * wo, c * kh * kw)
    return cols, ho, wo


def fused_backbone(images, class_images, w_conv, bn_scale, bn_shift,
                   *, stride=2, pad=1, tm=512, tk=512, tn=None):
    """Simplified shared backbone (conv3x3/s2 + folded BN + ReLU) applied to BOTH branches
    in a single tiled Pallas matmul call. Returns channels-last bf16 features."""
    # bf16 BEFORE patch extraction: halves the materialized (9x-inflated) patch matrix traffic.
    patches_img, ho, wo = im2col(images.astype(jnp.bfloat16), 3, 3, stride, pad)
    patches_cls, hc, wc = im2col(class_images.astype(jnp.bfloat16), 3, 3, stride, pad)
    m_img, k = patches_img.shape
    m_cls = patches_cls.shape[0]
    m = m_img + m_cls
    c_out = w_conv.shape[1]

    # Tile sizes: lane dims multiples of 128, sublane dims multiples of 8.
    # tn defaults to the FULL padded C_out so the patch matrix is streamed from HBM exactly once.
    k128 = _round_up(k, 128)
    n128 = _round_up(c_out, 128)
    m8 = _round_up(m, 8)
    tm_ = min(tm, m8)
    tk_ = min(tk, k128)
    tn_ = n128 if tn is None else min(_round_up(tn, 128), n128)
    m_pad = _round_up(m8, tm_)
    k_pad = _round_up(k128, tk_)
    n_pad = _round_up(n128, tn_)

    patches = jnp.concatenate([patches_img, patches_cls], axis=0)
    patches = jnp.pad(patches, ((0, m_pad - m), (0, k_pad - k)))
    w = jnp.pad(w_conv.astype(jnp.bfloat16), ((0, k_pad - k), (0, n_pad - c_out)))
    scale = jnp.pad(bn_scale.astype(jnp.float32), ((0, 0), (0, n_pad - c_out)))
    shift = jnp.pad(bn_shift.astype(jnp.float32), ((0, 0), (0, n_pad - c_out)))

    grid = (m_pad // tm_, n_pad // tn_, k_pad // tk_)
    out = pl.pallas_call(
        conv_bn_relu_kernel,
        out_shape=jax.ShapeDtypeStruct((m_pad, n_pad), jnp.bfloat16),
        grid_spec=pltpu.PrefetchScalarGridSpec(
            num_scalar_prefetch=0,
            grid=grid,
            in_specs=[
                pl.BlockSpec((tm_, tk_), lambda i, j, kk: (i, kk)),
                pl.BlockSpec((tk_, tn_), lambda i, j, kk: (kk, j)),
                pl.BlockSpec((1, tn_), lambda i, j, kk: (0, j)),
                pl.BlockSpec((1, tn_), lambda i, j, kk: (0, j)),
            ],
            out_specs=pl.BlockSpec((tm_, tn_), lambda i, j, kk: (i, j)),
            scratch_shapes=[pltpu.VMEM((tm_, tn_), jnp.float32)],
        ),
        compiler_params=pltpu.CompilerParams(
            dimension_semantics=("parallel", "parallel", "arbitrary"),
            vmem_limit_bytes=48 * 1024 * 1024,
        ),
        cost_estimate=pl.CostEstimate(
            flops=2 * m_pad * k_pad * n_pad,
            transcendentals=0,
            bytes_accessed=(m_pad * k_pad * 2 * (n_pad // tn_)   # patches re-read per N tile
                            + k_pad * n_pad * 2 * (m_pad // tm_)  # weights re-read per M tile
                            + m_pad * n_pad * 2),                 # output written once
        ),
    )(patches, w, scale, shift)

    feat = out[:, :c_out]
    feat_img = feat[:m_img].reshape(images.shape[0], ho, wo, c_out)
    feat_cls = feat[m_img:m].reshape(class_images.shape[0], hc, wc, c_out)
    return feat_img, feat_cls, (ho, wo)


# ----------------------------------------------------------------------------
# Kernel 2: OS2D head — L2-normalized correlation with the head weights folded
#           into the class features (single MXU matmul per anchor tile)
# ----------------------------------------------------------------------------
def os2d_head_kernel(f_ref, wg_ref, o_ref):
    # f_ref:  (1, ta, C)      bf16 image features for one anchor tile of one batch element
    # wg_ref: (L*16, C)       bf16 folded (head-weights @ normalized-class-features), resident
    # o_ref:  (1, L, 16, ta)  bf16 fused output slab (single lane-dense store)
    l16, _ = wg_ref.shape

    # Per-anchor L2 normalization of the image features (class side is pre-normalized + folded).
    f = f_ref[0].astype(jnp.float32)                                     # (ta, C)
    f_hat = (f * lax.rsqrt(jnp.sum(f * f, axis=-1, keepdims=True) + 1e-10)
             ).astype(jnp.bfloat16)

    # Single fused matmul: rows = [mean ; loc(4) ; corners(8) ; pad] for every label,
    # f32 accumulation on the MXU.
    out = lax.dot_general(
        wg_ref[...], f_hat,
        dimension_numbers=(((1,), (1,)), ((), ())),
        preferred_element_type=jnp.float32,
    )                                                                    # (L*16, ta)
    o_ref[0] = out.reshape(l16 // 16, 16, out.shape[-1]).astype(o_ref.dtype)


def apply_class_head(feat_img, feat_cls, w_loc, w_corner, *, anchor_tile=256):
    """feat_img: (B, H, W, C) bf16 ; feat_cls: (L, hc, wc, C) bf16."""
    b, h, w, c = feat_img.shape
    l, hc, wc, _ = feat_cls.shape
    a = h * w
    k = hc * wc

    ta = min(_round_up(anchor_tile, 128), _round_up(a, 128))
    a_pad = _round_up(a, ta)

    f = feat_img.reshape(b, a, c).astype(jnp.bfloat16)
    f = jnp.pad(f, ((0, 0), (0, a_pad - a), (0, 0)))

    # Class-feature L2 normalization hoisted out of the (B, anchor-tile) grid: done once, in f32.
    g = feat_cls.reshape(l, k, c).astype(jnp.float32)
    g_hat = g * lax.rsqrt(jnp.sum(g * g, axis=-1, keepdims=True) + 1e-10)  # (L, K, C)

    # Fused head weights (identical for every label):
    #   row 0 = mean pooling (classification), rows 1-4 = loc head, rows 5-12 = corner head, pad.
    w_mean = jnp.full((1, k), 1.0 / k, jnp.float32)
    w_fused = jnp.concatenate(
        [w_mean, w_loc.astype(jnp.float32), w_corner.astype(jnp.float32),
         jnp.zeros((3, k), jnp.float32)], axis=0)                          # (16, K)

    # W@G fold: every output row is linear in the correlation map, so collapse the class-spatial
    # axis K into the class weights once here -> resident block is (L*16, C) instead of (L*K, C).
    wg = jnp.einsum('rk,lkc->lrc', w_fused, g_hat)                         # (L, 16, C) f32
    wg = wg.reshape(l * 16, c).astype(jnp.bfloat16)

    grid = (b, a_pad // ta)
    flops_per_step = 2 * (l * 16) * c * ta + 4 * ta * c
    out = pl.pallas_call(
        os2d_head_kernel,
        out_shape=jax.ShapeDtypeStruct((b, l, 16, a_pad), jnp.bfloat16),
        grid_spec=pltpu.PrefetchScalarGridSpec(
            num_scalar_prefetch=0,
            grid=grid,
            in_specs=[
                pl.BlockSpec((1, ta, c), lambda bi, ai: (bi, ai, 0)),
                pl.BlockSpec((l * 16, c), lambda bi, ai: (0, 0)),
            ],
            out_specs=pl.BlockSpec((1, l, 16, ta), lambda bi, ai: (bi, 0, 0, ai)),
        ),
        compiler_params=pltpu.CompilerParams(
            dimension_semantics=("parallel", "parallel"),
            vmem_limit_bytes=48 * 1024 * 1024,
        ),
        cost_estimate=pl.CostEstimate(
            flops=grid[0] * grid[1] * flops_per_step,
            transcendentals=b * a_pad,                              # rsqrt per anchor
            bytes_accessed=(b * a_pad * c * 2                       # image features (bf16)
                            + grid[0] * grid[1] * l * 16 * c * 2    # folded class block per step
                            + b * l * 16 * a_pad * 2),              # bf16 output slab
        ),
    )(f, wg)

    cls = out[:, :, 0, :a].astype(jnp.float32)        # (B, L, A)
    loc = out[:, :, 1:5, :a].astype(jnp.float32)      # (B, L, 4, A)
    cor = out[:, :, 5:13, :a].astype(jnp.float32)     # (B, L, 8, A)
    return loc, cls, cor


# ----------------------------------------------------------------------------
# Os2dModel.forward equivalent
# ----------------------------------------------------------------------------
def os2d_forward(images, class_images, params):
    """images: (B, 3, H, W) NCHW ; class_images: (L, 3, hc, wc) NCHW (stacked list)."""
    feat_img, feat_cls, fm_size = fused_backbone(
        images, class_images,
        params["w_conv"], params["bn_scale"], params["bn_shift"])

    loc_scores, class_scores, transform_corners = apply_class_head(
        feat_img, feat_cls, params["w_loc"], params["w_corner"], anchor_tile=256)

    # identical values in forward; only gradient flow differs
    class_scores_transform_detached = lax.stop_gradient(class_scores)
    return (loc_scores, class_scores, class_scores_transform_detached,
            fm_size, transform_corners)


if __name__ == "__main__":
    key = jax.random.PRNGKey(0)
    k_img, k_cls, k_w, k_bn, k_loc, k_cor = jax.random.split(key, 6)

    B, C_in, H, W = 2, 3, 32, 32          # input images (NCHW, like PyTorch)
    L, hc_in, wc_in = 3, 16, 16           # 3 class images of size 16x16
    C_feat = 128                          # synthetic feature_dim (real OS2D: 1024)

    images = jax.random.normal(k_img, (B, C_in, H, W), jnp.float32)
    class_images = jax.random.normal(k_cls, (L, C_in, hc_in, wc_in), jnp.float32)

    # class feature map spatial extent after stride-2 conv: 8x8 -> K = 64
    K_cls = (hc_in // 2) * (wc_in // 2)

    params = {
        "w_conv": jax.random.normal(k_w, (C_in * 3 * 3, C_feat), jnp.float32) * 0.1,
        "bn_scale": 1.0 + 0.01 * jax.random.normal(k_bn, (1, C_feat), jnp.float32),
        "bn_shift": jnp.zeros((1, C_feat), jnp.float32),
        "w_loc": jax.random.normal(k_loc, (4, K_cls), jnp.float32) * 0.1,
        "w_corner": jax.random.normal(k_cor, (8, K_cls), jnp.float32) * 0.1,
    }

    outs = os2d_forward(images, class_images, params)
    loc_scores, class_scores, class_scores_td, fm_size, transform_corners = outs
    jax.block_until_ready((loc_scores, class_scores, class_scores_td, transform_corners))

    num_anchors = fm_size[0] * fm_size[1]
    assert loc_scores.shape == (B, L, 4, num_anchors)
    assert class_scores.shape == (B, L, num_anchors)
    assert class_scores_td.shape == (B, L, num_anchors)
    assert transform_corners.shape == (B, L, 8, num_anchors)
    assert jnp.all(jnp.isfinite(class_scores)) and jnp.all(jnp.isfinite(loc_scores))

    print("KERNEL_OK")
</pallas_src>

<mosaic_0001>
module attributes {stable_mosaic.version = 11 : i64} {
  func.func @conv_bn_relu_kernel(%arg0: i32, %arg1: i32, %arg2: i32, %arg3: memref<512x128xbf16, #tpu.memory_space<vmem>>, %arg4: memref<128x128xbf16, #tpu.memory_space<vmem>>, %arg5: memref<1x128xf32, #tpu.memory_space<vmem>>, %arg6: memref<1x128xf32, #tpu.memory_space<vmem>>, %arg7: memref<512x128xbf16, #tpu.memory_space<vmem>>, %arg8: memref<512x128xf32, #tpu.memory_space<vmem>>) attributes {dimension_semantics = [#tpu.dimension_semantics<parallel>, #tpu.dimension_semantics<parallel>, #tpu.dimension_semantics<arbitrary>], iteration_bounds = array<i64: 2, 1, 1>, scalar_prefetch = 0 : i64, scratch_operands = 1 : i64, tpu.core_type = #tpu.core_type<tc>, window_params = [{transform_indices = @transform_0, window_bounds = array<i64: 512, 128>}, {transform_indices = @transform_1, window_bounds = array<i64: 128, 128>}, {transform_indices = @transform_2, window_bounds = array<i64: 1, 128>}, {transform_indices = @transform_3, window_bounds = array<i64: 1, 128>}, {transform_indices = @transform_4, window_bounds = array<i64: 512, 128>}]} {
    %c0_i32 = arith.constant 0 : i32
    %0 = arith.cmpi eq, %arg2, %c0_i32 : i32
    %1 = arith.extui %0 : i1 to i32
    %c0_i32_0 = arith.constant 0 : i32
    %2 = arith.cmpi ne, %1, %c0_i32_0 : i32
    scf.if %2 {
      %cst_10 = arith.constant 0.000000e+00 : f32
      %12 = vector.broadcast %cst_10 : f32 to vector<512x128xf32>
      %c0_11 = arith.constant 0 : index
      %c0_12 = arith.constant 0 : index
      %13 = vector.load %arg8[%c0_11, %c0_12] : memref<512x128xf32, #tpu.memory_space<vmem>>, vector<512x128xf32>
      tpu.vector_store %arg8[%c0_11, %c0_12], %12 {strides = array<i32>} : memref<512x128xf32, #tpu.memory_space<vmem>>, vector<512x128xf32>,
    } else {
    }
    %c0 = arith.constant 0 : index
    %c0_1 = arith.constant 0 : index
    %3 = vector.load %arg8[%c0, %c0_1] : memref<512x128xf32, #tpu.memory_space<vmem>>, vector<512x128xf32>
    %c0_2 = arith.constant 0 : index
    %c0_3 = arith.constant 0 : index
    %4 = vector.load %arg3[%c0_2, %c0_3] : memref<512x128xbf16, #tpu.memory_space<vmem>>, vector<512x128xbf16>
    %c0_4 = arith.constant 0 : index
    %c0_5 = arith.constant 0 : index
    %5 = vector.load %arg4[%c0_4, %c0_5] : memref<128x128xbf16, #tpu.memory_space<vmem>>, vector<128x128xbf16>
    %cst = arith.constant dense<0.000000e+00> : vector<512x128xf32>
    %6 = tpu.matmul %4, %5, %cst {dimension_numbers = #tpu.dot_dimension_numbers<[1], [0], [0], [1], [0, 0, 1, 1], [], []>} : vector<512x128xbf16>, vector<128x128xbf16>, vector<512x128xf32> -> vector<512x128xf32>
    %7 = arith.addf %3, %6 : vector<512x128xf32>
    %c0_6 = arith.constant 0 : index
    %c0_7 = arith.constant 0 : index
    %8 = vector.load %arg8[%c0_6, %c0_7] : memref<512x128xf32, #tpu.memory_space<vmem>>, vector<512x128xf32>
    tpu.vector_store %arg8[%c0_6, %c0_7], %7 {strides = array<i32>} : memref<512x128xf32, #tpu.memory_space<vmem>>, vector<512x128xf32>,
    %c0_i32_8 = arith.constant 0 : i32
    %9 = arith.cmpi eq, %arg2, %c0_i32_8 : i32
    %10 = arith.extui %9 : i1 to i32
    %c0_i32_9 = arith.constant 0 : i32
    %11 = arith.cmpi ne, %10, %c0_i32_9 : i32
    scf.if %11 {
      %c0_10 = arith.constant 0 : index
      %c0_11 = arith.constant 0 : index
      %12 = vector.load %arg8[%c0_10, %c0_11] : memref<512x128xf32, #tpu.memory_space<vmem>>, vector<512x128xf32>
      %c0_12 = arith.constant 0 : index
      %c0_13 = arith.constant 0 : index
      %13 = vector.load %arg5[%c0_12, %c0_13] : memref<1x128xf32, #tpu.memory_space<vmem>>, vector<1x128xf32>
      %14 = vector.broadcast %13 : vector<1x128xf32> to vector<512x128xf32>
      %15 = arith.mulf %12, %14 : vector<512x128xf32>
      %c0_14 = arith.constant 0 : index
      %c0_15 = arith.constant 0 : index
      %16 = vector.load %arg6[%c0_14, %c0_15] : memref<1x128xf32, #tpu.memory_space<vmem>>, vector<1x128xf32>
      %17 = vector.broadcast %16 : vector<1x128xf32> to vector<512x128xf32>
      %18 = arith.addf %15, %17 : vector<512x128xf32>
      %cst_16 = arith.constant 0.000000e+00 : f32
      %19 = vector.broadcast %cst_16 : f32 to vector<512x128xf32>
      %20 = arith.maximumf %18, %19 : vector<512x128xf32>
      %21 = arith.truncf %20 : vector<512x128xf32> to vector<512x128xbf16>
      %c0_17 = arith.constant 0 : index
      %c0_18 = arith.constant 0 : index
      %22 = vector.load %arg7[%c0_17, %c0_18] : memref<512x128xbf16, #tpu.memory_space<vmem>>, vector<512x128xbf16>
      tpu.vector_store %arg7[%c0_17, %c0_18], %21 {strides = array<i32>} : memref<512x128xbf16, #tpu.memory_space<vmem>>, vector<512x128xbf16>,
    } else {
    }
    return
  }
  func.func @transform_0(%arg0: i32, %arg1: i32, %arg2: i32) -> (i32, i32) {
    %c0_i32 = arith.constant 0 : i32
    return %arg0, %arg2 : i32, i32
  }
  func.func @transform_1(%arg0: i32, %arg1: i32, %arg2: i32) -> (i32, i32) {
    %c0_i32 = arith.constant 0 : i32
    return %arg2, %arg1 : i32, i32
  }
  func.func @transform_2(%arg0: i32, %arg1: i32, %arg2: i32) -> (i32, i32) {
    %c0_i32 = arith.constant 0 : i32
    %c0_i32_0 = arith.constant 0 : i32
    return %c0_i32, %arg1 : i32, i32
  }
  func.func @transform_3(%arg0: i32, %arg1: i32, %arg2: i32) -> (i32, i32) {
    %c0_i32 = arith.constant 0 : i32
    %c0_i32_0 = arith.constant 0 : i32
    return %c0_i32, %arg1 : i32, i32
  }
  func.func @transform_4(%arg0: i32, %arg1: i32, %arg2: i32) -> (i32, i32) {
    %c0_i32 = arith.constant 0 : i32
    return %arg0, %arg1 : i32, i32
  }
}

</mosaic_0001>

<llo_original>
// kernel: tpu_custom_call.1
$region0: #{tpu_custom_call.1}
  #allocation0 [shape = 'u32[]', space=smem, size = 0x4, offset = 0x4, fixed_abs, tag = 'smem constant byte address 0x4 - core index']
  #allocation1 [shape = 'u32[72,128]{1,0:T(1,128)}', space=vmem, size = 0x9000, scoped, tag = 'internal scratch']
  #allocation2 [shape = 'f32[512,128]{1,0:T(8,128)}', space=vmem, size = 0x40000, scoped, tag = 'scratch operand']
  %s0 = inlined_call_operand.hbm [shape: bf16[1024,128], index: 0, kind: input, shape index: {}]
  %s1 = inlined_call_operand.hbm [shape: bf16[128,128], index: 1, kind: input, shape index: {}]
  %s2 = inlined_call_operand.vmem [shape: f32[1,128], index: 2, kind: input, shape index: {}]
  %s3 = inlined_call_operand.vmem [shape: f32[1,128], index: 3, kind: input, shape index: {}]
  %s4 = inlined_call_operand.hbm [shape: bf16[1024,128], index: 4, kind: output, shape index: {}]
  %s5 = sld [smem:[#allocation0]]
  $region65: #{tpu_custom_call.1} parent=0
    _
  %s7 = ssub.s32 1, %s5
  %s8 = scalar_select 0, %s7, %s5
  $region1: #{tpu_custom_call.1} parent=0
    #allocation3 [shape = 'u8[262144]{0}', space=vmem, size = 0x40000, scoped, tag = 'input window, operand 0']
    #allocation4 [shape = 's32[2]{0}', space=sflag, size = 0x8, scoped, tag = 'scoped memory for tpu_custom_call.1']
    #allocation5 [shape = 's32[2]{0}', space=sflag, size = 0x8, scoped, tag = 'scoped memory for tpu_custom_call.1']
    #allocation6 [shape = 'u8[32768]{0}', space=vmem, size = 0x8000, scoped, tag = 'input window, operand 1, single buffered']
    #allocation7 [shape = 's32[1]{0}', space=sflag, size = 0x4, scoped, tag = 'scoped memory for tpu_custom_call.1']
    #allocation8 [shape = 'u8[262144]{0}', space=vmem, size = 0x40000, scoped, tag = 'output window, operand 0']
    %9 = vsyncpa [#allocation4], 0
    %s10 = scalar_lea.sflag [#allocation4], 1
    %11 = vsyncpa %s10, 0
    %12 = vsyncpa [#allocation7], 0
    %13 = vsyncpa [#allocation5], 0
    %s14 = scalar_lea.sflag [#allocation5], 1
    %15 = vsyncpa %s14, 0
    loop: start=0, step=1, limit=4
    $region2: #{tpu_custom_call.1} parent=1 // loop_pre_header
      _
    $region3: #{tpu_custom_call.1} parent=1 // loop_header
      %s17 = sphi 0, %s21
      %p18 = scmp.ge.s32.totalorder %s17, 4
      %s24 = sphi 0, %s43
      %s25 = sphi 0, %s39
      %s26 = sphi 0, %s35
      %s27 = sphi 0, %s24
      %s28 = sphi 0, %s25
      %s29 = sphi 0, %s26
      %s30 = sphi 0, %s27
      %s31 = sphi 0, %s28
      %s32 = sphi 0, %s29
      %s48 = sphi 0, %s50
      %s51 = sphi 0, %s48
      %s52 = sphi 0, %s51
      %s68 = sphi 0, %s52
      %s76 = sphi 0, %s78
      %s79 = sphi 0, %s76
      %s80 = sphi 0, %s79
      %s96 = sphi 0, %s80
      %s102 = sphi 0, %s104
      %s105 = sphi 0, %s102
      %s106 = sphi 0, %s105
      %s122 = sphi 0, %s106
      %s128 = sphi 0, %s130
      %s131 = sphi 0, %s128
      %s132 = sphi 0, %s131
      %s148 = sphi 0, %s132
      %s156 = sphi 0, %s158
      %s159 = sphi 0, %s156
      %s160 = sphi 0, %s159
      %s176 = sphi 0, %s160
    $region4: #{tpu_custom_call.1} parent=1 // loop_header_branch
      %20 = sbr.rel (%p18) target = $region8
    $region5: #{tpu_custom_call.1} parent=1 // loop_body
      %s22 = ssub.s32 %s17, 1
      %s23 = ssub.s32 %s17, 2
      %s33 = sadd.s32 1, %s26
      %p34 = scmp.ge.s32.totalorder %s33, 1
      %s35 = scalar_select %p34, 0, %s33
      %s36 = sadd.s32 1, %s25
      %s37 = scalar_select %p34, %s36, %s25
      %p38 = scmp.ge.s32.totalorder %s37, 1
      %s39 = scalar_select %p38, 0, %s37
      %s40 = sadd.s32 1, %s24
      %s41 = scalar_select %p38, %s40, %s24
      %p42 = scmp.ge.s32.totalorder %s41, 2
      %s43 = scalar_select %p42, 0, %s41
      %s44 = ssub.s32 %s24, %s43
      %s45 = ssub.s32 %s26, %s35
      %s46 = sor.u32 %s44, %s45
      %p47 = scmp.eq.s32.totalorder %s46, 0
      %s49 = sadd.s32 %s48, 1
      %s50 = scalar_select %p47, %s48, %s49
      %p53 = pneg %p47
      %p54 = scmp.eq.s32.totalorder %s17, 1
      %p55 = por %p53, %p54
      %p56 = scmp.ne.s32.totalorder %s48, %s51
      %p57 = scmp.eq.s32.totalorder %s17, 0
      %p58 = por %p56, %p57
      %p59 = scmp.ne.s32.totalorder %s48, %s51
      %p60 = scmp.eq.s32.totalorder %s22, 1
      %p61 = por %p59, %p60
      %p62 = scmp.ne.s32.totalorder %s51, %s52
      %p63 = scmp.eq.s32.totalorder %s22, 0
      %p64 = por %p62, %p63
      %p65 = scmp.ne.s32.totalorder %s51, %s52
      %p66 = scmp.eq.s32.totalorder %s23, 1
      %p67 = por %p65, %p66
      %p69 = scmp.ne.s32.totalorder %s52, %s68
      %p70 = scmp.eq.s32.totalorder %s23, 0
      %p71 = por %p69, %p70
      %s72 = ssub.s32 %s26, %s35
      %s73 = ssub.s32 %s25, %s39
      %s74 = sor.u32 %s72, %s73
      %p75 = scmp.eq.s32.totalorder %s74, 0
      %s77 = sadd.s32 %s76, 1
      %s78 = scalar_select %p75, %s76, %s77
      %p81 = pneg %p75
      %p82 = scmp.eq.s32.totalorder %s17, 1
      %p83 = por %p81, %p82
      %p84 = scmp.ne.s32.totalorder %s76, %s79
      %p85 = scmp.eq.s32.totalorder %s17, 0
      %p86 = por %p84, %p85
      %p87 = scmp.ne.s32.totalorder %s76, %s79
      %p88 = scmp.eq.s32.totalorder %s22, 1
      %p89 = por %p87, %p88
      %p90 = scmp.ne.s32.totalorder %s79, %s80
      %p91 = scmp.eq.s32.totalorder %s22, 0
      %p92 = por %p90, %p91
      %p93 = scmp.ne.s32.totalorder %s79, %s80
      %p94 = scmp.eq.s32.totalorder %s23, 1
      %p95 = por %p93, %p94
      %p97 = scmp.ne.s32.totalorder %s80, %s96
      %p98 = scmp.eq.s32.totalorder %s23, 0
      %p99 = por %p97, %p98
      %s100 = ssub.s32 %s25, %s39
      %p101 = scmp.eq.s32.totalorder %s100, 0
      %s103 = sadd.s32 %s102, 1
      %s104 = scalar_select %p101, %s102, %s103
      %p107 = pneg %p101
      %p108 = scmp.eq.s32.totalorder %s17, 1
      %p109 = por %p107, %p108
      %p110 = scmp.ne.s32.totalorder %s102, %s105
      %p111 = scmp.eq.s32.totalorder %s17, 0
      %p112 = por %p110, %p111
      %p113 = scmp.ne.s32.totalorder %s102, %s105
      %p114 = scmp.eq.s32.totalorder %s22, 1
      %p115 = por %p113, %p114
      %p116 = scmp.ne.s32.totalorder %s105, %s106
      %p117 = scmp.eq.s32.totalorder %s22, 0
      %p118 = por %p116, %p117
      %p119 = scmp.ne.s32.totalorder %s105, %s106
      %p120 = scmp.eq.s32.totalorder %s23, 1
      %p121 = por %p119, %p120
      %p123 = scmp.ne.s32.totalorder %s106, %s122
      %p124 = scmp.eq.s32.totalorder %s23, 0
      %p125 = por %p123, %p124
      %s126 = ssub.s32 %s25, %s39
      %p127 = scmp.eq.s32.totalorder %s126, 0
      %s129 = sadd.s32 %s128, 1
      %s130 = scalar_select %p127, %s128, %s129
      %p133 = pneg %p127
      %p134 = scmp.eq.s32.totalorder %s17, 1
      %p135 = por %p133, %p134
      %p136 = scmp.ne.s32.totalorder %s128, %s131
      %p137 = scmp.eq.s32.totalorder %s17, 0
      %p138 = por %p136, %p137
      %p139 = scmp.ne.s32.totalorder %s128, %s131
      %p140 = scmp.eq.s32.totalorder %s22, 1
      %p141 = por %p139, %p140
      %p142 = scmp.ne.s32.totalorder %s131, %s132
      %p143 = scmp.eq.s32.totalorder %s22, 0
      %p144 = por %p142, %p143
      %p145 = scmp.ne.s32.totalorder %s131, %s132
      %p146 = scmp.eq.s32.totalorder %s23, 1
      %p147 = por %p145, %p146
      %p149 = scmp.ne.s32.totalorder %s132, %s148
      %p150 = scmp.eq.s32.totalorder %s23, 0
      %p151 = por %p149, %p150
      %s152 = ssub.s32 %s24, %s43
      %s153 = ssub.s32 %s25, %s39
      %s154 = sor.u32 %s152, %s153
      %p155 = scmp.eq.s32.totalorder %s154, 0
      %s157 = sadd.s32 %s156, 1
      %s158 = scalar_select %p155, %s156, %s157
      %p161 = pneg %p155
      %p162 = scmp.eq.s32.totalorder %s17, 1
      %p163 = por %p161, %p162
      %p164 = scmp.ne.s32.totalorder %s156, %s159
      %p165 = scmp.eq.s32.totalorder %s17, 0
      %p166 = por %p164, %p165
      %p167 = scmp.ne.s32.totalorder %s156, %s159
      %p168 = scmp.eq.s32.totalorder %s22, 1
      %p169 = por %p167, %p168
      %p170 = scmp.ne.s32.totalorder %s159, %s160
      %p171 = scmp.eq.s32.totalorder %s22, 0
      %p172 = por %p170, %p171
      %p173 = scmp.ne.s32.totalorder %s159, %s160
      %p174 = scmp.eq.s32.totalorder %s23, 1
      %p175 = por %p173, %p174
      %p177 = scmp.ne.s32.totalorder %s160, %s176
      %p178 = scmp.eq.s32.totalorder %s23, 0
      %p179 = por %p177, %p178
      %p180 = scmp.le.s32.totalorder 1, %s17
      %p181 = scmp.lt.s32.totalorder %s17, 3
      %p182 = pnand %p180, %p181
      %p183 = pneg %p182
      // Predicated region
      $region9: #{tpu_custom_call.1} parent=5 // pred_check
        _
      $region10: #{tpu_custom_call.1} parent=5 // pred_check_branch
        %185 = sbr.rel (%p182) target = $region12
      $region11: #{tpu_custom_call.1} parent=5 // pred_region
        %s186 = ssub.s32 %s17, 1
        // Predicated region
        $region13: #{tpu_custom_call.1} parent=11 // pred_check
          %p187 = pneg %p92
        $region14: #{tpu_custom_call.1} parent=11 // pred_check_branch
          %189 = sbr.rel (%p187) target = $region16
        $region15: #{tpu_custom_call.1} parent=11 // pred_region
          %s190 = smul.u32 16, %s29
          %192 = vsyncadd [#allocation7], 0
          %s193 = sadd.s32 %s28, %s190
          %s194 = smul.addr %s193, 4
          %s195 = scalar_lea.hbm %s1, %s194
          %s196 = sshll.u32 %s195, 4
          %s197 = int_to_ptr.hbm [resolvable:$true] %s196
          %s198 = sshll.u32 [#allocation6], 4
          %s199 = int_to_ptr.vmem [resolvable:$true] %s198
          %204 = dma.hbm_to_vmem [thread:$0]  %s197, 1024, %s199, [#allocation7], 64, 64, 4
        $region16: #{tpu_custom_call.1} parent=11 // pred_fallthru
          _
        // Predicated region
        $region17: #{tpu_custom_call.1} parent=11 // pred_check
          %p205 = pneg %p118
        $region18: #{tpu_custom_call.1} parent=11 // pred_check_branch
          %207 = sbr.rel (%p205) target = $region20
        $region19: #{tpu_custom_call.1} parent=11 // pred_region
          %p208 = scmp.lt.s32.totalorder %s28, 0
          %s209 = scalar_select %p208, %s28, 0
          %s210 = scalar_lea.vmem %s2, %s209
        $region20: #{tpu_custom_call.1} parent=11 // pred_fallthru
          _
        // Predicated region
        $region21: #{tpu_custom_call.1} parent=11 // pred_check
          %p211 = pneg %p144
        $region22: #{tpu_custom_call.1} parent=11 // pred_check_branch
          %213 = sbr.rel (%p211) target = $region24
        $region23: #{tpu_custom_call.1} parent=11 // pred_region
          %p214 = scmp.lt.s32.totalorder %s28, 0
          %s215 = scalar_select %p214, %s28, 0
          %s216 = scalar_lea.vmem %s3, %s215
        $region24: #{tpu_custom_call.1} parent=11 // pred_fallthru
          _
      $region12: #{tpu_custom_call.1} parent=5 // pred_fallthru
        _
      %p217 = scmp.lt.s32.totalorder %s17, 2
      // Predicated region
      $region25: #{tpu_custom_call.1} parent=5 // pred_check
        %p218 = pneg %p217
      $region26: #{tpu_custom_call.1} parent=5 // pred_check_branch
        %220 = sbr.rel (%p218) target = $region28
      $region27: #{tpu_custom_call.1} parent=5 // pred_region
        // Predicated region
        $region29: #{tpu_custom_call.1} parent=27 // pred_check
          %p221 = pneg %p58
        $region30: #{tpu_custom_call.1} parent=27 // pred_check_branch
          %223 = sbr.rel (%p221) target = $region32
        $region31: #{tpu_custom_call.1} parent=27 // pred_region
          %s224 = sand.u32 %s48, 1
          %s225 = scalar_lea.sflag [#allocation4], %s224
          %s226 = sand.u32 %s48, 1
          %s227 = smul.addr %s226, 256
          %s228 = scalar_lea.vmem [#allocation3], %s227
          %s229 = smul.u32 64, %s24
          %231 = vsyncadd %s225, 0
          %s232 = sadd.s32 %s26, %s229
          %s233 = smul.addr %s232, 4
          %s234 = scalar_lea.hbm %s0, %s233
          %s235 = sshll.u32 %s234, 4
          %s236 = int_to_ptr.hbm [resolvable:$true] %s235
          %s237 = sshll.u32 %s228, 4
          %s238 = int_to_ptr.vmem [resolvable:$true] %s237
          %243 = dma.hbm_to_vmem [thread:$0]  %s236, 4096, %s238, %s225, 64, 64, 4
        $region32: #{tpu_custom_call.1} parent=27 // pred_fallthru
          _
      $region28: #{tpu_custom_call.1} parent=5 // pred_fallthru
        _
      %p244 = scmp.le.s32.totalorder 1, %s17
      %p245 = scmp.lt.s32.totalorder %s17, 3
      %p246 = pnand %p244, %p245
      %p247 = pneg %p246
      // Predicated region
      $region33: #{tpu_custom_call.1} parent=5 // pred_check
        _
      $region34: #{tpu_custom_call.1} parent=5 // pred_check_branch
        %249 = sbr.rel (%p246) target = $region36
      $region35: #{tpu_custom_call.1} parent=5 // pred_region
        %s250 = ssub.s32 %s17, 1
        %s251 = sand.u32 %s51, 1
        %s252 = scalar_lea.sflag [#allocation4], %s251
        %s253 = sand.u32 %s51, 1
        %s254 = smul.addr %s253, 256
        %s255 = scalar_lea.vmem [#allocation3], %s254
        // Predicated region
        $region37: #{tpu_custom_call.1} parent=35 // pred_check
          %p256 = pneg %p64
        $region38: #{tpu_custom_call.1} parent=35 // pred_check_branch
          %258 = sbr.rel (%p256) target = $region40
        $region39: #{tpu_custom_call.1} parent=35 // pred_region
          %260 = dma.done %s252, 4096
        $region40: #{tpu_custom_call.1} parent=35 // pred_fallthru
          _
        // Predicated region
        $region41: #{tpu_custom_call.1} parent=35 // pred_check
          %p261 = pneg %p92
        $region42: #{tpu_custom_call.1} parent=35 // pred_check_branch
          %263 = sbr.rel (%p261) target = $region44
        $region43: #{tpu_custom_call.1} parent=35 // pred_region
          %265 = dma.done [#allocation7], 1024
        $region44: #{tpu_custom_call.1} parent=35 // pred_fallthru
          _
        %s266 = sand.u32 %s51, 1
        %s267 = scalar_lea.sflag [#allocation4], %s266
        %s268 = sand.u32 %s51, 1
        %s269 = smul.addr %s268, 256
        %s270 = scalar_lea.vmem [#allocation3], %s269
        %p271 = pneg %p64
        %p272 = pneg %p61
        %p273 = pneg %p92
        %p274 = pneg %p89
        %p275 = scmp.lt.s32.totalorder %s28, 0
        %s276 = scalar_select %p275, %s28, 0
        %s277 = scalar_lea.vmem %s2, %s276
        %p278 = pneg %p118
        %p279 = pneg %p115
        %p280 = scmp.lt.s32.totalorder %s28, 0
        %s281 = scalar_select %p280, %s28, 0
        %s282 = scalar_lea.vmem %s3, %s281
        %p283 = pneg %p144
        %p284 = pneg %p141
        %p285 = pneg %p172
        %p286 = pneg %p169
        %s287 = sand.u32 %s159, 1
        %s288 = scalar_lea.sflag [#allocation5], %s287
        %s289 = sand.u32 %s159, 1
        %s290 = smul.addr %s289, 256
        %s291 = scalar_lea.vmem [#allocation8], %s290
        %s292 = smul.u32 64, %s27
        %s293 = smul.u32 16, %s29
        %p294 = scmp.lt.s32.totalorder %s28, 0
        %s295 = scalar_select %p294, %s28, 0
        %s296 = scalar_lea.vmem %s2, %s295
        %p297 = scmp.lt.s32.totalorder %s28, 0
        %s298 = scalar_select %p297, %s28, 0
        %s299 = scalar_lea.vmem %s3, %s298
        %s300 = smul.u32 64, %s27
        %p301 = scmp.eq.s32.totalorder %s29, 0
        // Predicated region
        $region45: #{tpu_custom_call.1} parent=35 // pred_check
          %p302 = pneg %p301
        $region46: #{tpu_custom_call.1} parent=35 // pred_check_branch
          %304 = sbr.rel (%p302) target = $region48
        $region47: #{tpu_custom_call.1} parent=35 // pred_region
          %305 = vst [vmem:[#allocation2] sm:$0xff] 0.0
          %306 = vst [vmem:[#allocation2 + $0x8] sm:$0xff] 0.0
          %307 = vst [vmem:[#allocation2 + $0x10] sm:$0xff] 0.0
          %308 = vst [vmem:[#allocation2 + $0x18] sm:$0xff] 0.0
          %309 = vst [vmem:[#allocation2 + $0x20] sm:$0xff] 0.0
          %310 = vst [vmem:[#allocation2 + $0x28] sm:$0xff] 0.0
          %311 = vst [vmem:[#allocation2 + $0x30] sm:$0xff] 0.0
          %312 = vst [vmem:[#allocation2 + $0x38] sm:$0xff] 0.0
          %313 = vst [vmem:[#allocation2 + $0x40] sm:$0xff] 0.0
          %314 = vst [vmem:[#allocation2 + $0x48] sm:$0xff] 0.0
          %315 = vst [vmem:[#allocation2 + $0x50] sm:$0xff] 0.0
          %316 = vst [vmem:[#allocation2 + $0x58] sm:$0xff] 0.0
          %317 = vst [vmem:[#allocation2 + $0x60] sm:$0xff] 0.0
          %318 = vst [vmem:[#allocation2 + $0x68] sm:$0xff] 0.0
          %319 = vst [vmem:[#allocation2 + $0x70] sm:$0xff] 0.0
          %320 = vst [vmem:[#allocation2 + $0x78] sm:$0xff] 0.0
          %321 = vst [vmem:[#allocation2 + $0x80] sm:$0xff] 0.0
          %322 = vst [vmem:[#allocation2 + $0x88] sm:$0xff] 0.0
          %323 = vst [vmem:[#allocation2 + $0x90] sm:$0xff] 0.0
          %324 = vst [vmem:[#allocation2 + $0x98] sm:$0xff] 0.0
          %325 = vst [vmem:[#allocation2 + $0xa0] sm:$0xff] 0.0
          %326 = vst [vmem:[#allocation2 + $0xa8] sm:$0xff] 0.0
          %327 = vst [vmem:[#allocation2 + $0xb0] sm:$0xff] 0.0
          %328 = vst [vmem:[#allocation2 + $0xb8] sm:$0xff] 0.0
          %329 = vst [vmem:[#allocation2 + $0xc0] sm:$0xff] 0.0
          %330 = vst [vmem:[#allocation2 + $0xc8] sm:$0xff] 0.0
          %331 = vst [vmem:[#allocation2 + $0xd0] sm:$0xff] 0.0
          %332 = vst [vmem:[#allocation2 + $0xd8] sm:$0xff] 0.0
          %333 = vst [vmem:[#allocation2 + $0xe0] sm:$0xff] 0.0
          %334 = vst [vmem:[#allocation2 + $0xe8] sm:$0xff] 0.0
          %335 = vst [vmem:[#allocation2 + $0xf0] sm:$0xff] 0.0
          %336 = vst [vmem:[#allocation2 + $0xf8] sm:$0xff] 0.0
          %337 = vst [vmem:[#allocation2 + $0x100] sm:$0xff] 0.0
          %338 = vst [vmem:[#allocation2 + $0x108] sm:$0xff] 0.0
          %339 = vst [vmem:[#allocation2 + $0x110] sm:$0xff] 0.0
          %340 = vst [vmem:[#allocation2 + $0x118] sm:$0xff] 0.0
          %341 = vst [vmem:[#allocation2 + $0x120] sm:$0xff] 0.0
          %342 = vst [vmem:[#allocation2 + $0x128] sm:$0xff] 0.0
          %343 = vst [vmem:[#allocation2 + $0x130] sm:$0xff] 0.0
          %344 = vst [vmem:[#allocation2 + $0x138] sm:$0xff] 0.0
          %345 = vst [vmem:[#allocation2 + $0x140] sm:$0xff] 0.0
          %346 = vst [vmem:[#allocation2 + $0x148] sm:$0xff] 0.0
          %347 = vst [vmem:[#allocation2 + $0x150] sm:$0xff] 0.0
          %348 = vst [vmem:[#allocation2 + $0x158] sm:$0xff] 0.0
          %349 = vst [vmem:[#allocation2 + $0x160] sm:$0xff] 0.0
          %350 = vst [vmem:[#allocation2 + $0x168] sm:$0xff] 0.0
          %351 = vst [vmem:[#allocation2 + $0x170] sm:$0xff] 0.0
          %352 = vst [vmem:[#allocation2 + $0x178] sm:$0xff] 0.0
          %353 = vst [vmem:[#allocation2 + $0x180] sm:$0xff] 0.0
          %354 = vst [vmem:[#allocation2 + $0x188] sm:$0xff] 0.0
          %355 = vst [vmem:[#allocation2 + $0x190] sm:$0xff] 0.0
          %356 = vst [vmem:[#allocation2 + $0x198] sm:$0xff] 0.0
          %357 = vst [vmem:[#allocation2 + $0x1a0] sm:$0xff] 0.0
          %358 = vst [vmem:[#allocation2 + $0x1a8] sm:$0xff] 0.0
          %359 = vst [vmem:[#allocation2 + $0x1b0] sm:$0xff] 0.0
          %360 = vst [vmem:[#allocation2 + $0x1b8] sm:$0xff] 0.0
          %361 = vst [vmem:[#allocation2 + $0x1c0] sm:$0xff] 0.0
          %362 = vst [vmem:[#allocation2 + $0x1c8] sm:$0xff] 0.0
          %363 = vst [vmem:[#allocation2 + $0x1d0] sm:$0xff] 0.0
          %364 = vst [vmem:[#allocation2 + $0x1d8] sm:$0xff] 0.0
          %365 = vst [vmem:[#allocation2 + $0x1e0] sm:$0xff] 0.0
          %366 = vst [vmem:[#allocation2 + $0x1e8] sm:$0xff] 0.0
          %367 = vst [vmem:[#allocation2 + $0x1f0] sm:$0xff] 0.0
          %368 = vst [vmem:[#allocation2 + $0x1f8] sm:$0xff] 0.0
        $region48: #{tpu_custom_call.1} parent=35 // pred_fallthru
          _
        %v369 = vld [vmem:[#allocation2] sm:$0xff]
        %v370 = vld [vmem:[#allocation2 + $0x8] sm:$0xff]
        %v371 = vld [vmem:[#allocation2 + $0x10] sm:$0xff]
        %v372 = vld [vmem:[#allocation2 + $0x18] sm:$0xff]
        %v373 = vld [vmem:[#allocation2 + $0x20] sm:$0xff]
        %v374 = vld [vmem:[#allocation2 + $0x28] sm:$0xff]
        %v375 = vld [vmem:[#allocation2 + $0x30] sm:$0xff]
        %v376 = vld [vmem:[#allocation2 + $0x38] sm:$0xff]
        %v377 = vld [vmem:[#allocation2 + $0x40] sm:$0xff]
        %v378 = vld [vmem:[#allocation2 + $0x48] sm:$0xff]
        %v379 = vld [vmem:[#allocation2 + $0x50] sm:$0xff]
        %v380 = vld [vmem:[#allocation2 + $0x58] sm:$0xff]
        %v381 = vld [vmem:[#allocation2 + $0x60] sm:$0xff]
        %v382 = vld [vmem:[#allocation2 + $0x68] sm:$0xff]
        %v383 = vld [vmem:[#allocation2 + $0x70] sm:$0xff]
        %v384 = vld [vmem:[#allocation2 + $0x78] sm:$0xff]
        %v385 = vld [vmem:[#allocation2 + $0x80] sm:$0xff]
        %v386 = vld [vmem:[#allocation2 + $0x88] sm:$0xff]
        %v387 = vld [vmem:[#allocation2 + $0x90] sm:$0xff]
        %v388 = vld [vmem:[#allocation2 + $0x98] sm:$0xff]
        %v389 = vld [vmem:[#allocation2 + $0xa0] sm:$0xff]
        %v390 = vld [vmem:[#allocation2 + $0xa8] sm:$0xff]
        %v391 = vld [vmem:[#allocation2 + $0xb0] sm:$0xff]
        %v392 = vld [vmem:[#allocation2 + $0xb8] sm:$0xff]
        %v393 = vld [vmem:[#allocation2 + $0xc0] sm:$0xff]
        %v394 = vld [vmem:[#allocation2 + $0xc8] sm:$0xff]
        %v395 = vld [vmem:[#allocation2 + $0xd0] sm:$0xff]
        %v396 = vld [vmem:[#allocation2 + $0xd8] sm:$0xff]
        %v397 = vld [vmem:[#allocation2 + $0xe0] sm:$0xff]
        %v398 = vld [vmem:[#allocation2 + $0xe8] sm:$0xff]
        %v399 = vld [vmem:[#allocation2 + $0xf0] sm:$0xff]
        %v400 = vld [vmem:[#allocation2 + $0xf8] sm:$0xff]
        %v401 = vld [vmem:[#allocation2 + $0x100] sm:$0xff]
        %v402 = vld [vmem:[#allocation2 + $0x108] sm:$0xff]
        %v403 = vld [vmem:[#allocation2 + $0x110] sm:$0xff]
        %v404 = vld [vmem:[#allocation2 + $0x118] sm:$0xff]
        %v405 = vld [vmem:[#allocation2 + $0x120] sm:$0xff]
        %v406 = vld [vmem:[#allocation2 + $0x128] sm:$0xff]
        %v407 = vld [vmem:[#allocation2 + $0x130] sm:$0xff]
        %v408 = vld [vmem:[#allocation2 + $0x138] sm:$0xff]
        %v409 = vld [vmem:[#allocation2 + $0x140] sm:$0xff]
        %v410 = vld [vmem:[#allocation2 + $0x148] sm:$0xff]
        %v411 = vld [vmem:[#allocation2 + $0x150] sm:$0xff]
        %v412 = vld [vmem:[#allocation2 + $0x158] sm:$0xff]
        %v413 = vld [vmem:[#allocation2 + $0x160] sm:$0xff]
        %v414 = vld [vmem:[#allocation2 + $0x168] sm:$0xff]
        %v415 = vld [vmem:[#allocation2 + $0x170] sm:$0xff]
        %v416 = vld [vmem:[#allocation2 + $0x178] sm:$0xff]
        %v417 = vld [vmem:[#allocation2 + $0x180] sm:$0xff]
        %v418 = vld [vmem:[#allocation2 + $0x188] sm:$0xff]
        %v419 = vld [vmem:[#allocation2 + $0x190] sm:$0xff]
        %v420 = vld [vmem:[#allocation2 + $0x198] sm:$0xff]
        %v421 = vld [vmem:[#allocation2 + $0x1a0] sm:$0xff]
        %v422 = vld [vmem:[#allocation2 + $0x1a8] sm:$0xff]
        %v423 = vld [vmem:[#allocation2 + $0x1b0] sm:$0xff]
        %v424 = vld [vmem:[#allocation2 + $0x1b8] sm:$0xff]
        %v425 = vld [vmem:[#allocation2 + $0x1c0] sm:$0xff]
        %v426 = vld [vmem:[#allocation2 + $0x1c8] sm:$0xff]
        %v427 = vld [vmem:[#allocation2 + $0x1d0] sm:$0xff]
        %v428 = vld [vmem:[#allocation2 + $0x1d8] sm:$0xff]
        %v429 = vld [vmem:[#allocation2 + $0x1e0] sm:$0xff]
        %v430 = vld [vmem:[#allocation2 + $0x1e8] sm:$0xff]
        %v431 = vld [vmem:[#allocation2 + $0x1f0] sm:$0xff]
        %v432 = vld [vmem:[#allocation2 + $0x1f8] sm:$0xff]
        %v433 = vld [vmem:[%s255] sm:$0xf]
        %v434 = vld [vmem:[%s255 + $0x4] sm:$0xf]
        %v435 = vld [vmem:[%s255 + $0x8] sm:$0xf]
        %v436 = vld [vmem:[%s255 + $0xc] sm:$0xf]
        %v437 = vld [vmem:[%s255 + $0x10] sm:$0xf]
        %v438 = vld [vmem:[%s255 + $0x14] sm:$0xf]
        %v439 = vld [vmem:[%s255 + $0x18] sm:$0xf]
        %v440 = vld [vmem:[%s255 + $0x1c] sm:$0xf]
        %v441 = vld [vmem:[%s255 + $0x20] sm:$0xf]
        %v442 = vld [vmem:[%s255 + $0x24] sm:$0xf]
        %v443 = vld [vmem:[%s255 + $0x28] sm:$0xf]
        %v444 = vld [vmem:[%s255 + $0x2c] sm:$0xf]
        %v445 = vld [vmem:[%s255 + $0x30] sm:$0xf]
        %v446 = vld [vmem:[%s255 + $0x34] sm:$0xf]
        %v447 = vld [vmem:[%s255 + $0x38] sm:$0xf]
        %v448 = vld [vmem:[%s255 + $0x3c] sm:$0xf]
        %v449 = vld [vmem:[%s255 + $0x40] sm:$0xf]
        %v450 = vld [vmem:[%s255 + $0x44] sm:$0xf]
        %v451 = vld [vmem:[%s255 + $0x48] sm:$0xf]
        %v452 = vld [vmem:[%s255 + $0x4c] sm:$0xf]
        %v453 = vld [vmem:[%s255 + $0x50] sm:$0xf]
        %v454 = vld [vmem:[%s255 + $0x54] sm:$0xf]
        %v455 = vld [vmem:[%s255 + $0x58] sm:$0xf]
        %v456 = vld [vmem:[%s255 + $0x5c] sm:$0xf]
        %v457 = vld [vmem:[%s255 + $0x60] sm:$0xf]
        %v458 = vld [vmem:[%s255 + $0x64] sm:$0xf]
        %v459 = vld [vmem:[%s255 + $0x68] sm:$0xf]
        %v460 = vld [vmem:[%s255 + $0x6c] sm:$0xf]
        %v461 = vld [vmem:[%s255 + $0x70] sm:$0xf]
        %v462 = vld [vmem:[%s255 + $0x74] sm:$0xf]
        %v463 = vld [vmem:[%s255 + $0x78] sm:$0xf]
        %v464 = vld [vmem:[%s255 + $0x7c] sm:$0xf]
        %v465 = vld [vmem:[%s255 + $0x80] sm:$0xf]
        %v466 = vld [vmem:[%s255 + $0x84] sm:$0xf]
        %v467 = vld [vmem:[%s255 + $0x88] sm:$0xf]
        %v468 = vld [vmem:[%s255 + $0x8c] sm:$0xf]
        %v469 = vld [vmem:[%s255 + $0x90] sm:$0xf]
        %v470 = vld [vmem:[%s255 + $0x94] sm:$0xf]
        %v471 = vld [vmem:[%s255 + $0x98] sm:$0xf]
        %v472 = vld [vmem:[%s255 + $0x9c] sm:$0xf]
        %v473 = vld [vmem:[%s255 + $0xa0] sm:$0xf]
        %v474 = vld [vmem:[%s255 + $0xa4] sm:$0xf]
        %v475 = vld [vmem:[%s255 + $0xa8] sm:$0xf]
        %v476 = vld [vmem:[%s255 + $0xac] sm:$0xf]
        %v477 = vld [vmem:[%s255 + $0xb0] sm:$0xf]
        %v478 = vld [vmem:[%s255 + $0xb4] sm:$0xf]
        %v479 = vld [vmem:[%s255 + $0xb8] sm:$0xf]
        %v480 = vld [vmem:[%s255 + $0xbc] sm:$0xf]
        %v481 = vld [vmem:[%s255 + $0xc0] sm:$0xf]
        %v482 = vld [vmem:[%s255 + $0xc4] sm:$0xf]
        %v483 = vld [vmem:[%s255 + $0xc8] sm:$0xf]
        %v484 = vld [vmem:[%s255 + $0xcc] sm:$0xf]
        %v485 = vld [vmem:[%s255 + $0xd0] sm:$0xf]
        %v486 = vld [vmem:[%s255 + $0xd4] sm:$0xf]
        %v487 = vld [vmem:[%s255 + $0xd8] sm:$0xf]
        %v488 = vld [vmem:[%s255 + $0xdc] sm:$0xf]
        %v489 = vld [vmem:[%s255 + $0xe0] sm:$0xf]
        %v490 = vld [vmem:[%s255 + $0xe4] sm:$0xf]
        %v491 = vld [vmem:[%s255 + $0xe8] sm:$0xf]
        %v492 = vld [vmem:[%s255 + $0xec] sm:$0xf]
        %v493 = vld [vmem:[%s255 + $0xf0] sm:$0xf]
        %v494 = vld [vmem:[%s255 + $0xf4] sm:$0xf]
        %v495 = vld [vmem:[%s255 + $0xf8] sm:$0xf]
        %v496 = vld [vmem:[%s255 + $0xfc] sm:$0xf]
        %v497 = vld [vmem:[#allocation6] sm:$0xf]
        %v498 = vld [vmem:[#allocation6 + $0x4] sm:$0xf]
        %v499 = vld [vmem:[#allocation6 + $0x8] sm:$0xf]
        %v500 = vld [vmem:[#allocation6 + $0xc] sm:$0xf]
        %v501 = vld [vmem:[#allocation6 + $0x10] sm:$0xf]
        %v502 = vld [vmem:[#allocation6 + $0x14] sm:$0xf]
        %v503 = vld [vmem:[#allocation6 + $0x18] sm:$0xf]
        %v504 = vld [vmem:[#allocation6 + $0x1c] sm:$0xf]
        %v505 = vld [vmem:[#allocation6 + $0x20] sm:$0xf]
        %v506 = vld [vmem:[#allocation6 + $0x24] sm:$0xf]
        %v507 = vld [vmem:[#allocation6 + $0x28] sm:$0xf]
        %v508 = vld [vmem:[#allocation6 + $0x2c] sm:$0xf]
        %v509 = vld [vmem:[#allocation6 + $0x30] sm:$0xf]
        %v510 = vld [vmem:[#allocation6 + $0x34] sm:$0xf]
        %v511 = vld [vmem:[#allocation6 + $0x38] sm:$0xf]
        %v512 = vld [vmem:[#allocation6 + $0x3c] sm:$0xf]
        %v577 = vunpack.c.l.b16 %v433
        %v578 = vunpack.c.l.b16 %v434
        %v579 = vunpack.c.l.b16 %v435
        %v580 = vunpack.c.l.b16 %v436
        %v581 = vunpack.c.l.b16 %v437
        %v582 = vunpack.c.l.b16 %v438
        %v583 = vunpack.c.l.b16 %v439
        %v584 = vunpack.c.l.b16 %v440
        %v585 = vunpack.c.l.b16 %v441
        %v586 = vunpack.c.l.b16 %v442
        %v587 = vunpack.c.l.b16 %v443
        %v588 = vunpack.c.l.b16 %v444
        %v589 = vunpack.c.l.b16 %v445
        %v590 = vunpack.c.l.b16 %v446
        %v591 = vunpack.c.l.b16 %v447
        %v592 = vunpack.c.l.b16 %v448
        %v593 = vunpack.c.l.b16 %v449
        %v594 = vunpack.c.l.b16 %v450
        %v595 = vunpack.c.l.b16 %v451
        %v596 = vunpack.c.l.b16 %v452
        %v597 = vunpack.c.l.b16 %v453
        %v598 = vunpack.c.l.b16 %v454
        %v599 = vunpack.c.l.b16 %v455
        %v600 = vunpack.c.l.b16 %v456
        %v601 = vunpack.c.l.b16 %v457
        %v602 = vunpack.c.l.b16 %v458
        %v603 = vunpack.c.l.b16 %v459
        %v604 = vunpack.c.l.b16 %v460
        %v605 = vunpack.c.l.b16 %v461
        %v606 = vunpack.c.l.b16 %v462
        %v607 = vunpack.c.l.b16 %v463
        %v608 = vunpack.c.l.b16 %v464
        %v609 = vunpack.c.l.b16 %v465
        %v610 = vunpack.c.l.b16 %v466
        %v611 = vunpack.c.l.b16 %v467
        %v612 = vunpack.c.l.b16 %v468
        %v613 = vunpack.c.l.b16 %v469
        %v614 = vunpack.c.l.b16 %v470
        %v615 = vunpack.c.l.b16 %v471
        %v616 = vunpack.c.l.b16 %v472
        %v617 = vunpack.c.l.b16 %v473
        %v618 = vunpack.c.l.b16 %v474
        %v619 = vunpack.c.l.b16 %v475
        %v620 = vunpack.c.l.b16 %v476
        %v621 = vunpack.c.l.b16 %v477
        %v622 = vunpack.c.l.b16 %v478
        %v623 = vunpack.c.l.b16 %v479
        %v624 = vunpack.c.l.b16 %v480
        %v625 = vunpack.c.l.b16 %v481
        %v626 = vunpack.c.l.b16 %v482
        %v627 = vunpack.c.l.b16 %v483
        %v628 = vunpack.c.l.b16 %v484
        %v629 = vunpack.c.l.b16 %v485
        %v630 = vunpack.c.l.b16 %v486
        %v631 = vunpack.c.l.b16 %v487
        %v632 = vunpack.c.l.b16 %v488
        %v633 = vunpack.c.l.b16 %v489
        %v634 = vunpack.c.l.b16 %v490
        %v635 = vunpack.c.l.b16 %v491
        %v636 = vunpack.c.l.b16 %v492
        %v637 = vunpack.c.l.b16 %v493
        %v638 = vunpack.c.l.b16 %v494
        %v639 = vunpack.c.l.b16 %v495
        %v640 = vunpack.c.l.b16 %v496
        %v641 = vpack.c.b16 %v578, %v577
        %v642 = vpack.c.b16 %v580, %v579
        %v643 = vpack.c.b16 %v582, %v581
        %v644 = vpack.c.b16 %v584, %v583
        %v645 = vpack.c.b16 %v586, %v585
        %v646 = vpack.c.b16 %v588, %v587
        %v647 = vpack.c.b16 %v590, %v589
        %v648 = vpack.c.b16 %v592, %v591
        %v649 = vpack.c.b16 %v594, %v593
        %v650 = vpack.c.b16 %v596, %v595
        %v651 = vpack.c.b16 %v598, %v597
        %v652 = vpack.c.b16 %v600, %v599
        %v653 = vpack.c.b16 %v602, %v601
        %v654 = vpack.c.b16 %v604, %v603
        %v655 = vpack.c.b16 %v606, %v605
        %v656 = vpack.c.b16 %v608, %v607
        %v657 = vpack.c.b16 %v610, %v609
        %v658 = vpack.c.b16 %v612, %v611
        %v659 = vpack.c.b16 %v614, %v613
        %v660 = vpack.c.b16 %v616, %v615
        %v661 = vpack.c.b16 %v618, %v617
        %v662 = vpack.c.b16 %v620, %v619
        %v663 = vpack.c.b16 %v622, %v621
        %v664 = vpack.c.b16 %v624, %v623
        %v665 = vpack.c.b16 %v626, %v625
        %v666 = vpack.c.b16 %v628, %v627
        %v667 = vpack.c.b16 %v630, %v629
        %v668 = vpack.c.b16 %v632, %v631
        %v669 = vpack.c.b16 %v634, %v633
        %v670 = vpack.c.b16 %v636, %v635
        %v671 = vpack.c.b16 %v638, %v637
        %v672 = vpack.c.b16 %v640, %v639
        %v721 = vunpack.c.l.b16 %v497
        %v722 = vunpack.c.l.b16 %v498
        %v723 = vunpack.c.l.b16 %v499
        %v724 = vunpack.c.l.b16 %v500
        %v725 = vunpack.c.l.b16 %v501
        %v726 = vunpack.c.l.b16 %v502
        %v727 = vunpack.c.l.b16 %v503
        %v728 = vunpack.c.l.b16 %v504
        %v729 = vunpack.c.l.b16 %v505
        %v730 = vunpack.c.l.b16 %v506
        %v731 = vunpack.c.l.b16 %v507
        %v732 = vunpack.c.l.b16 %v508
        %v733 = vunpack.c.l.b16 %v509
        %v734 = vunpack.c.l.b16 %v510
        %v735 = vunpack.c.l.b16 %v511
        %v736 = vunpack.c.l.b16 %v512
        %v737 = vpack.c.b16 %v722, %v721
        %v738 = vpack.c.b16 %v724, %v723
        %v739 = vpack.c.b16 %v726, %v725
        %v740 = vpack.c.b16 %v728, %v727
        %v741 = vpack.c.b16 %v730, %v729
        %v742 = vpack.c.b16 %v732, %v731
        %v743 = vpack.c.b16 %v734, %v733
        %v744 = vpack.c.b16 %v736, %v735
        %753 = vmatpush.bf16.msra.mxu0 %v744
        %754 = vmatpush.bf16.msra.mxu0 %v743
        %755 = vmatpush.bf16.msra.mxu0 %v742
        %756 = vmatpush.bf16.msra.mxu0 %v741
        %757 = vmatpush.bf16.msra.mxu0 %v740
        %758 = vmatpush.bf16.msra.mxu0 %v739
        %759 = vmatpush.bf16.msra.mxu0 %v738
        %760 = vmatpush.bf16.msra.mxu0 %v737
        %761 = vmatmul.bf16.gmra.mxu0 %v641
        %v762 = vpop.f32.mrf.mxu0
        %v763 = vadd.f32 0.0, %v762
        %v764 = vpop.f32.mrf.mxu0
        %v765 = vadd.f32 0.0, %v764
        %766 = vmatmul.bf16.gmra.mxu0 %v642
        %v767 = vpop.f32.mrf.mxu0
        %v768 = vadd.f32 0.0, %v767
        %v769 = vpop.f32.mrf.mxu0
        %v770 = vadd.f32 0.0, %v769
        %771 = vmatmul.bf16.gmra.mxu0 %v643
        %v772 = vpop.f32.mrf.mxu0
        %v773 = vadd.f32 0.0, %v772
        %v774 = vpop.f32.mrf.mxu0
        %v775 = vadd.f32 0.0, %v774
        %776 = vmatmul.bf16.gmra.mxu0 %v644
        %v777 = vpop.f32.mrf.mxu0
        %v778 = vadd.f32 0.0, %v777
        %v779 = vpop.f32.mrf.mxu0
        %v780 = vadd.f32 0.0, %v779
        %781 = vmatmul.bf16.gmra.mxu0 %v645
        %v782 = vpop.f32.mrf.mxu0
        %v783 = vadd.f32 0.0, %v782
        %v784 = vpop.f32.mrf.mxu0
        %v785 = vadd.f32 0.0, %v784
        %786 = vmatmul.bf16.gmra.mxu0 %v646
        %v787 = vpop.f32.mrf.mxu0
        %v788 = vadd.f32 0.0, %v787
        %v789 = vpop.f32.mrf.mxu0
        %v790 = vadd.f32 0.0, %v789
        %791 = vmatmul.bf16.gmra.mxu0 %v647
        %v792 = vpop.f32.mrf.mxu0
        %v793 = vadd.f32 0.0, %v792
        %v794 = vpop.f32.mrf.mxu0
        %v795 = vadd.f32 0.0, %v794
        %796 = vmatmul.bf16.gmra.mxu0 %v648
        %v797 = vpop.f32.mrf.mxu0
        %v798 = vadd.f32 0.0, %v797
        %v799 = vpop.f32.mrf.mxu0
        %v800 = vadd.f32 0.0, %v799
        %801 = vmatmul.bf16.gmra.mxu0 %v649
        %v802 = vpop.f32.mrf.mxu0
        %v803 = vadd.f32 0.0, %v802
        %v804 = vpop.f32.mrf.mxu0
        %v805 = vadd.f32 0.0, %v804
        %806 = vmatmul.bf16.gmra.mxu0 %v650
        %v807 = vpop.f32.mrf.mxu0
        %v808 = vadd.f32 0.0, %v807
        %v809 = vpop.f32.mrf.mxu0
        %v810 = vadd.f32 0.0, %v809
        %811 = vmatmul.bf16.gmra.mxu0 %v651
        %v812 = vpop.f32.mrf.mxu0
        %v813 = vadd.f32 0.0, %v812
        %v814 = vpop.f32.mrf.mxu0
        %v815 = vadd.f32 0.0, %v814
        %816 = vmatmul.bf16.gmra.mxu0 %v652
        %v817 = vpop.f32.mrf.mxu0
        %v818 = vadd.f32 0.0, %v817
        %v819 = vpop.f32.mrf.mxu0
        %v820 = vadd.f32 0.0, %v819
        %821 = vmatmul.bf16.gmra.mxu0 %v653
        %v822 = vpop.f32.mrf.mxu0
        %v823 = vadd.f32 0.0, %v822
        %v824 = vpop.f32.mrf.mxu0
        %v825 = vadd.f32 0.0, %v824
        %826 = vmatmul.bf16.gmra.mxu0 %v654
        %v827 = vpop.f32.mrf.mxu0
        %v828 = vadd.f32 0.0, %v827
        %v829 = vpop.f32.mrf.mxu0
        %v830 = vadd.f32 0.0, %v829
        %831 = vmatmul.bf16.gmra.mxu0 %v655
        %v832 = vpop.f32.mrf.mxu0
        %v833 = vadd.f32 0.0, %v832
        %v834 = vpop.f32.mrf.mxu0
        %v835 = vadd.f32 0.0, %v834
        %836 = vmatmul.bf16.gmra.mxu0 %v656
        %v837 = vpop.f32.mrf.mxu0
        %v838 = vadd.f32 0.0, %v837
        %v839 = vpop.f32.mrf.mxu0
        %v840 = vadd.f32 0.0, %v839
        %841 = vmatmul.bf16.gmra.mxu0 %v657
        %v842 = vpop.f32.mrf.mxu0
        %v843 = vadd.f32 0.0, %v842
        %v844 = vpop.f32.mrf.mxu0
        %v845 = vadd.f32 0.0, %v844
        %846 = vmatmul.bf16.gmra.mxu0 %v658
        %v847 = vpop.f32.mrf.mxu0
        %v848 = vadd.f32 0.0, %v847
        %v849 = vpop.f32.mrf.mxu0
        %v850 = vadd.f32 0.0, %v849
        %851 = vmatmul.bf16.gmra.mxu0 %v659
        %v852 = vpop.f32.mrf.mxu0
        %v853 = vadd.f32 0.0, %v852
        %v854 = vpop.f32.mrf.mxu0
        %v855 = vadd.f32 0.0, %v854
        %856 = vmatmul.bf16.gmra.mxu0 %v660
        %v857 = vpop.f32.mrf.mxu0
        %v858 = vadd.f32 0.0, %v857
        %v859 = vpop.f32.mrf.mxu0
        %v860 = vadd.f32 0.0, %v859
        %861 = vmatmul.bf16.gmra.mxu0 %v661
        %v862 = vpop.f32.mrf.mxu0
        %v863 = vadd.f32 0.0, %v862
        %v864 = vpop.f32.mrf.mxu0
        %v865 = vadd.f32 0.0, %v864
        %866 = vmatmul.bf16.gmra.mxu0 %v662
        %v867 = vpop.f32.mrf.mxu0
        %v868 = vadd.f32 0.0, %v867
        %v869 = vpop.f32.mrf.mxu0
        %v870 = vadd.f32 0.0, %v869
        %871 = vmatmul.bf16.gmra.mxu0 %v663
        %v872 = vpop.f32.mrf.mxu0
        %v873 = vadd.f32 0.0, %v872
        %v874 = vpop.f32.mrf.mxu0
        %v875 = vadd.f32 0.0, %v874
        %876 = vmatmul.bf16.gmra.mxu0 %v664
        %v877 = vpop.f32.mrf.mxu0
        %v878 = vadd.f32 0.0, %v877
        %v879 = vpop.f32.mrf.mxu0
        %v880 = vadd.f32 0.0, %v879
        %881 = vmatmul.bf16.gmra.mxu0 %v665
        %v882 = vpop.f32.mrf.mxu0
        %v883 = vadd.f32 0.0, %v882
        %v884 = vpop.f32.mrf.mxu0
        %v885 = vadd.f32 0.0, %v884
        %886 = vmatmul.bf16.gmra.mxu0 %v666
        %v887 = vpop.f32.mrf.mxu0
        %v888 = vadd.f32 0.0, %v887
        %v889 = vpop.f32.mrf.mxu0
        %v890 = vadd.f32 0.0, %v889
        %891 = vmatmul.bf16.gmra.mxu0 %v667
        %v892 = vpop.f32.mrf.mxu0
        %v893 = vadd.f32 0.0, %v892
        %v894 = vpop.f32.mrf.mxu0
        %v895 = vadd.f32 0.0, %v894
        %896 = vmatmul.bf16.gmra.mxu0 %v668
        %v897 = vpop.f32.mrf.mxu0
        %v898 = vadd.f32 0.0, %v897
        %v899 = vpop.f32.mrf.mxu0
        %v900 = vadd.f32 0.0, %v899
        %901 = vmatmul.bf16.gmra.mxu0 %v669
        %v902 = vpop.f32.mrf.mxu0
        %v903 = vadd.f32 0.0, %v902
        %v904 = vpop.f32.mrf.mxu0
        %v905 = vadd.f32 0.0, %v904
        %906 = vmatmul.bf16.gmra.mxu0 %v670
        %v907 = vpop.f32.mrf.mxu0
        %v908 = vadd.f32 0.0, %v907
        %v909 = vpop.f32.mrf.mxu0
        %v910 = vadd.f32 0.0, %v909
        %911 = vmatmul.bf16.gmra.mxu0 %v671
        %v912 = vpop.f32.mrf.mxu0
        %v913 = vadd.f32 0.0, %v912
        %v914 = vpop.f32.mrf.mxu0
        %v915 = vadd.f32 0.0, %v914
        %916 = vmatmul.bf16.gmra.mxu0 %v672
        %v917 = vpop.f32.mrf.mxu0
        %v918 = vadd.f32 0.0, %v917
        %v919 = vpop.f32.mrf.mxu0
        %v920 = vadd.f32 0.0, %v919
        %921 = vdwg.mxu0
        %v922 = vadd.f32 %v369, %v763
        %v923 = vadd.f32 %v370, %v765
        %v924 = vadd.f32 %v371, %v768
        %v925 = vadd.f32 %v372, %v770
        %v926 = vadd.f32 %v373, %v773
        %v927 = vadd.f32 %v374, %v775
        %v928 = vadd.f32 %v375, %v778
        %v929 = vadd.f32 %v376, %v780
        %v930 = vadd.f32 %v377, %v783
        %v931 = vadd.f32 %v378, %v785
        %v932 = vadd.f32 %v379, %v788
        %v933 = vadd.f32 %v380, %v790
        %v934 = vadd.f32 %v381, %v793
        %v935 = vadd.f32 %v382, %v795
        %v936 = vadd.f32 %v383, %v798
        %v937 = vadd.f32 %v384, %v800
        %v938 = vadd.f32 %v385, %v803
        %v939 = vadd.f32 %v386, %v805
        %v940 = vadd.f32 %v387, %v808
        %v941 = vadd.f32 %v388, %v810
        %v942 = vadd.f32 %v389, %v813
        %v943 = vadd.f32 %v390, %v815
        %v944 = vadd.f32 %v391, %v818
        %v945 = vadd.f32 %v392, %v820
        %v946 = vadd.f32 %v393, %v823
        %v947 = vadd.f32 %v394, %v825
        %v948 = vadd.f32 %v395, %v828
        %v949 = vadd.f32 %v396, %v830
        %v950 = vadd.f32 %v397, %v833
        %v951 = vadd.f32 %v398, %v835
        %v952 = vadd.f32 %v399, %v838
        %v953 = vadd.f32 %v400, %v840
        %v954 = vadd.f32 %v401, %v843
        %v955 = vadd.f32 %v402, %v845
        %v956 = vadd.f32 %v403, %v848
        %v957 = vadd.f32 %v404, %v850
        %v958 = vadd.f32 %v405, %v853
        %v959 = vadd.f32 %v406, %v855
        %v960 = vadd.f32 %v407, %v858
        %v961 = vadd.f32 %v408, %v860
        %v962 = vadd.f32 %v409, %v863
        %v963 = vadd.f32 %v410, %v865
        %v964 = vadd.f32 %v411, %v868
        %v965 = vadd.f32 %v412, %v870
        %v966 = vadd.f32 %v413, %v873
        %v967 = vadd.f32 %v414, %v875
        %v968 = vadd.f32 %v415, %v878
        %v969 = vadd.f32 %v416, %v880
        %v970 = vadd.f32 %v417, %v883
        %v971 = vadd.f32 %v418, %v885
        %v972 = vadd.f32 %v419, %v888
        %v973 = vadd.f32 %v420, %v890
        %v974 = vadd.f32 %v421, %v893
        %v975 = vadd.f32 %v422, %v895
        %v976 = vadd.f32 %v423, %v898
        %v977 = vadd.f32 %v424, %v900
        %v978 = vadd.f32 %v425, %v903
        %v979 = vadd.f32 %v426, %v905
        %v980 = vadd.f32 %v427, %v908
        %v981 = vadd.f32 %v428, %v910
        %v982 = vadd.f32 %v429, %v913
        %v983 = vadd.f32 %v430, %v915
        %v984 = vadd.f32 %v431, %v918
        %v985 = vadd.f32 %v432, %v920
        %986 = vst [vmem:[#allocation2] sm:$0xff] %v922
        %987 = vst [vmem:[#allocation2 + $0x8] sm:$0xff] %v923
        %988 = vst [vmem:[#allocation2 + $0x10] sm:$0xff] %v924
        %989 = vst [vmem:[#allocation2 + $0x18] sm:$0xff] %v925
        %990 = vst [vmem:[#allocation2 + $0x20] sm:$0xff] %v926
        %991 = vst [vmem:[#allocation2 + $0x28] sm:$0xff] %v927
        %992 = vst [vmem:[#allocation2 + $0x30] sm:$0xff] %v928
        %993 = vst [vmem:[#allocation2 + $0x38] sm:$0xff] %v929
        %994 = vst [vmem:[#allocation2 + $0x40] sm:$0xff] %v930
        %995 = vst [vmem:[#allocation2 + $0x48] sm:$0xff] %v931
        %996 = vst [vmem:[#allocation2 + $0x50] sm:$0xff] %v932
        %997 = vst [vmem:[#allocation2 + $0x58] sm:$0xff] %v933
        %998 = vst [vmem:[#allocation2 + $0x60] sm:$0xff] %v934
        %999 = vst [vmem:[#allocation2 + $0x68] sm:$0xff] %v935
        %1000 = vst [vmem:[#allocation2 + $0x70] sm:$0xff] %v936
        %1001 = vst [vmem:[#allocation2 + $0x78] sm:$0xff] %v937
        %1002 = vst [vmem:[#allocation2 + $0x80] sm:$0xff] %v938
        %1003 = vst [vmem:[#allocation2 + $0x88] sm:$0xff] %v939
        %1004 = vst [vmem:[#allocation2 + $0x90] sm:$0xff] %v940
        %1005 = vst [vmem:[#allocation2 + $0x98] sm:$0xff] %v941
        %1006 = vst [vmem:[#allocation2 + $0xa0] sm:$0xff] %v942
        %1007 = vst [vmem:[#allocation2 + $0xa8] sm:$0xff] %v943
        %1008 = vst [vmem:[#allocation2 + $0xb0] sm:$0xff] %v944
        %1009 = vst [vmem:[#allocation2 + $0xb8] sm:$0xff] %v945
        %1010 = vst [vmem:[#allocation2 + $0xc0] sm:$0xff] %v946
        %1011 = vst [vmem:[#allocation2 + $0xc8] sm:$0xff] %v947
        %1012 = vst [vmem:[#allocation2 + $0xd0] sm:$0xff] %v948
        %1013 = vst [vmem:[#allocation2 + $0xd8] sm:$0xff] %v949
        %1014 = vst [vmem:[#allocation2 + $0xe0] sm:$0xff] %v950
        %1015 = vst [vmem:[#allocation2 + $0xe8] sm:$0xff] %v951
        %1016 = vst [vmem:[#allocation2 + $0xf0] sm:$0xff] %v952
        %1017 = vst [vmem:[#allocation2 + $0xf8] sm:$0xff] %v953
        %1018 = vst [vmem:[#allocation2 + $0x100] sm:$0xff] %v954
        %1019 = vst [vmem:[#allocation2 + $0x108] sm:$0xff] %v955
        %1020 = vst [vmem:[#allocation2 + $0x110] sm:$0xff] %v956
        %1021 = vst [vmem:[#allocation2 + $0x118] sm:$0xff] %v957
        %1022 = vst [vmem:[#allocation2 + $0x120] sm:$0xff] %v958
        %1023 = vst [vmem:[#allocation2 + $0x128] sm:$0xff] %v959
        %1024 = vst [vmem:[#allocation2 + $0x130] sm:$0xff] %v960
        %1025 = vst [vmem:[#allocation2 + $0x138] sm:$0xff] %v961
        %1026 = vst [vmem:[#allocation2 + $0x140] sm:$0xff] %v962
        %1027 = vst [vmem:[#allocation2 + $0x148] sm:$0xff] %v963
        %1028 = vst [vmem:[#allocation2 + $0x150] sm:$0xff] %v964
        %1029 = vst [vmem:[#allocation2 + $0x158] sm:$0xff] %v965
        %1030 = vst [vmem:[#allocation2 + $0x160] sm:$0xff] %v966
        %1031 = vst [vmem:[#allocation2 + $0x168] sm:$0xff] %v967
        %1032 = vst [vmem:[#allocation2 + $0x170] sm:$0xff] %v968
        %1033 = vst [vmem:[#allocation2 + $0x178] sm:$0xff] %v969
        %1034 = vst [vmem:[#allocation2 + $0x180] sm:$0xff] %v970
        %1035 = vst [vmem:[#allocation2 + $0x188] sm:$0xff] %v971
        %1036 = vst [vmem:[#allocation2 + $0x190] sm:$0xff] %v972
        %1037 = vst [vmem:[#allocation2 + $0x198] sm:$0xff] %v973
        %1038 = vst [vmem:[#allocation2 + $0x1a0] sm:$0xff] %v974
        %1039 = vst [vmem:[#allocation2 + $0x1a8] sm:$0xff] %v975
        %1040 = vst [vmem:[#allocation2 + $0x1b0] sm:$0xff] %v976
        %1041 = vst [vmem:[#allocation2 + $0x1b8] sm:$0xff] %v977
        %1042 = vst [vmem:[#allocation2 + $0x1c0] sm:$0xff] %v978
        %1043 = vst [vmem:[#allocation2 + $0x1c8] sm:$0xff] %v979
        %1044 = vst [vmem:[#allocation2 + $0x1d0] sm:$0xff] %v980
        %1045 = vst [vmem:[#allocation2 + $0x1d8] sm:$0xff] %v981
        %1046 = vst [vmem:[#allocation2 + $0x1e0] sm:$0xff] %v982
        %1047 = vst [vmem:[#allocation2 + $0x1e8] sm:$0xff] %v983
        %1048 = vst [vmem:[#allocation2 + $0x1f0] sm:$0xff] %v984
        %1049 = vst [vmem:[#allocation2 + $0x1f8] sm:$0xff] %v985
        // Predicated region
        $region49: #{tpu_custom_call.1} parent=35 // pred_check
          %p1050 = pneg %p301
        $region50: #{tpu_custom_call.1} parent=35 // pred_check_branch
          %1052 = sbr.rel (%p1050) target = $region52
        $region51: #{tpu_custom_call.1} parent=35 // pred_region
          %v1053 = vld [vmem:[#allocation2] sm:$0xff]
          %v1054 = vld [vmem:[#allocation2 + $0x8] sm:$0xff]
          %v1055 = vld [vmem:[#allocation2 + $0x10] sm:$0xff]
          %v1056 = vld [vmem:[#allocation2 + $0x18] sm:$0xff]
          %v1057 = vld [vmem:[#allocation2 + $0x20] sm:$0xff]
          %v1058 = vld [vmem:[#allocation2 + $0x28] sm:$0xff]
          %v1059 = vld [vmem:[#allocation2 + $0x30] sm:$0xff]
          %v1060 = vld [vmem:[#allocation2 + $0x38] sm:$0xff]
          %v1061 = vld [vmem:[#allocation2 + $0x40] sm:$0xff]
          %v1062 = vld [vmem:[#allocation2 + $0x48] sm:$0xff]
          %v1063 = vld [vmem:[#allocation2 + $0x50] sm:$0xff]
          %v1064 = vld [vmem:[#allocation2 + $0x58] sm:$0xff]
          %v1065 = vld [vmem:[#allocation2 + $0x60] sm:$0xff]
          %v1066 = vld [vmem:[#allocation2 + $0x68] sm:$0xff]
          %v1067 = vld [vmem:[#allocation2 + $0x70] sm:$0xff]
          %v1068 = vld [vmem:[#allocation2 + $0x78] sm:$0xff]
          %v1069 = vld [vmem:[#allocation2 + $0x80] sm:$0xff]
          %v1070 = vld [vmem:[#allocation2 + $0x88] sm:$0xff]
          %v1071 = vld [vmem:[#allocation2 + $0x90] sm:$0xff]
          %v1072 = vld [vmem:[#allocation2 + $0x98] sm:$0xff]
          %v1073 = vld [vmem:[#allocation2 + $0xa0] sm:$0xff]
          %v1074 = vld [vmem:[#allocation2 + $0xa8] sm:$0xff]
          %v1075 = vld [vmem:[#allocation2 + $0xb0] sm:$0xff]
          %v1076 = vld [vmem:[#allocation2 + $0xb8] sm:$0xff]
          %v1077 = vld [vmem:[#allocation2 + $0xc0] sm:$0xff]
          %v1078 = vld [vmem:[#allocation2 + $0xc8] sm:$0xff]
          %v1079 = vld [vmem:[#allocation2 + $0xd0] sm:$0xff]
          %v1080 = vld [vmem:[#allocation2 + $0xd8] sm:$0xff]
          %v1081 = vld [vmem:[#allocation2 + $0xe0] sm:$0xff]
          %v1082 = vld [vmem:[#allocation2 + $0xe8] sm:$0xff]
          %v1083 = vld [vmem:[#allocation2 + $0xf0] sm:$0xff]
          %v1084 = vld [vmem:[#allocation2 + $0xf8] sm:$0xff]
          %v1085 = vld [vmem:[#allocation2 + $0x100] sm:$0xff]
          %v1086 = vld [vmem:[#allocation2 + $0x108] sm:$0xff]
          %v1087 = vld [vmem:[#allocation2 + $0x110] sm:$0xff]
          %v1088 = vld [vmem:[#allocation2 + $0x118] sm:$0xff]
          %v1089 = vld [vmem:[#allocation2 + $0x120] sm:$0xff]
          %v1090 = vld [vmem:[#allocation2 + $0x128] sm:$0xff]
          %v1091 = vld [vmem:[#allocation2 + $0x130] sm:$0xff]
          %v1092 = vld [vmem:[#allocation2 + $0x138] sm:$0xff]
          %v1093 = vld [vmem:[#allocation2 + $0x140] sm:$0xff]
          %v1094 = vld [vmem:[#allocation2 + $0x148] sm:$0xff]
          %v1095 = vld [vmem:[#allocation2 + $0x150] sm:$0xff]
          %v1096 = vld [vmem:[#allocation2 + $0x158] sm:$0xff]
          %v1097 = vld [vmem:[#allocation2 + $0x160] sm:$0xff]
          %v1098 = vld [vmem:[#allocation2 + $0x168] sm:$0xff]
          %v1099 = vld [vmem:[#allocation2 + $0x170] sm:$0xff]
          %v1100 = vld [vmem:[#allocation2 + $0x178] sm:$0xff]
          %v1101 = vld [vmem:[#allocation2 + $0x180] sm:$0xff]
          %v1102 = vld [vmem:[#allocation2 + $0x188] sm:$0xff]
          %v1103 = vld [vmem:[#allocation2 + $0x190] sm:$0xff]
          %v1104 = vld [vmem:[#allocation2 + $0x198] sm:$0xff]
          %v1105 = vld [vmem:[#allocation2 + $0x1a0] sm:$0xff]
          %v1106 = vld [vmem:[#allocation2 + $0x1a8] sm:$0xff]
          %v1107 = vld [vmem:[#allocation2 + $0x1b0] sm:$0xff]
          %v1108 = vld [vmem:[#allocation2 + $0x1b8] sm:$0xff]
          %v1109 = vld [vmem:[#allocation2 + $0x1c0] sm:$0xff]
          %v1110 = vld [vmem:[#allocation2 + $0x1c8] sm:$0xff]
          %v1111 = vld [vmem:[#allocation2 + $0x1d0] sm:$0xff]
          %v1112 = vld [vmem:[#allocation2 + $0x1d8] sm:$0xff]
          %v1113 = vld [vmem:[#allocation2 + $0x1e0] sm:$0xff]
          %v1114 = vld [vmem:[#allocation2 + $0x1e8] sm:$0xff]
          %v1115 = vld [vmem:[#allocation2 + $0x1f0] sm:$0xff]
          %v1116 = vld [vmem:[#allocation2 + $0x1f8] sm:$0xff]
          %v1117 = vld [vmem:[%s296] sm:$0x1]
          %v1119 = vperm.slane %v1117, 0
          %v1121 = vmul.f32 %v1053, %v1119
          %v1122 = vmul.f32 %v1054, %v1119
          %v1123 = vmul.f32 %v1055, %v1119
          %v1124 = vmul.f32 %v1056, %v1119
          %v1125 = vmul.f32 %v1057, %v1119
          %v1126 = vmul.f32 %v1058, %v1119
          %v1127 = vmul.f32 %v1059, %v1119
          %v1128 = vmul.f32 %v1060, %v1119
          %v1129 = vmul.f32 %v1061, %v1119
          %v1130 = vmul.f32 %v1062, %v1119
          %v1131 = vmul.f32 %v1063, %v1119
          %v1132 = vmul.f32 %v1064, %v1119
          %v1133 = vmul.f32 %v1065, %v1119
          %v1134 = vmul.f32 %v1066, %v1119
          %v1135 = vmul.f32 %v1067, %v1119
          %v1136 = vmul.f32 %v1068, %v1119
          %v1137 = vmul.f32 %v1069, %v1119
          %v1138 = vmul.f32 %v1070, %v1119
          %v1139 = vmul.f32 %v1071, %v1119
          %v1140 = vmul.f32 %v1072, %v1119
          %v1141 = vmul.f32 %v1073, %v1119
          %v1142 = vmul.f32 %v1074, %v1119
          %v1143 = vmul.f32 %v1075, %v1119
          %v1144 = vmul.f32 %v1076, %v1119
          %v1145 = vmul.f32 %v1077, %v1119
          %v1146 = vmul.f32 %v1078, %v1119
          %v1147 = vmul.f32 %v1079, %v1119
          %v1148 = vmul.f32 %v1080, %v1119
          %v1149 = vmul.f32 %v1081, %v1119
          %v1150 = vmul.f32 %v1082, %v1119
          %v1151 = vmul.f32 %v1083, %v1119
          %v1152 = vmul.f32 %v1084, %v1119
          %v1153 = vmul.f32 %v1085, %v1119
          %v1154 = vmul.f32 %v1086, %v1119
          %v1155 = vmul.f32 %v1087, %v1119
          %v1156 = vmul.f32 %v1088, %v1119
          %v1157 = vmul.f32 %v1089, %v1119
          %v1158 = vmul.f32 %v1090, %v1119
          %v1159 = vmul.f32 %v1091, %v1119
          %v1160 = vmul.f32 %v1092, %v1119
          %v1161 = vmul.f32 %v1093, %v1119
          %v1162 = vmul.f32 %v1094, %v1119
          %v1163 = vmul.f32 %v1095, %v1119
          %v1164 = vmul.f32 %v1096, %v1119
          %v1165 = vmul.f32 %v1097, %v1119
          %v1166 = vmul.f32 %v1098, %v1119
          %v1167 = vmul.f32 %v1099, %v1119
          %v1168 = vmul.f32 %v1100, %v1119
          %v1169 = vmul.f32 %v1101, %v1119
          %v1170 = vmul.f32 %v1102, %v1119
          %v1171 = vmul.f32 %v1103, %v1119
          %v1172 = vmul.f32 %v1104, %v1119
          %v1173 = vmul.f32 %v1105, %v1119
          %v1174 = vmul.f32 %v1106, %v1119
          %v1175 = vmul.f32 %v1107, %v1119
          %v1176 = vmul.f32 %v1108, %v1119
          %v1177 = vmul.f32 %v1109, %v1119
          %v1178 = vmul.f32 %v1110, %v1119
          %v1179 = vmul.f32 %v1111, %v1119
          %v1180 = vmul.f32 %v1112, %v1119
          %v1181 = vmul.f32 %v1113, %v1119
          %v1182 = vmul.f32 %v1114, %v1119
          %v1183 = vmul.f32 %v1115, %v1119
          %v1184 = vmul.f32 %v1116, %v1119
          %v1185 = vld [vmem:[%s299] sm:$0x1]
          %v1187 = vperm.slane %v1185, 0
          %v1189 = vadd.f32 %v1121, %v1187
          %v1190 = vadd.f32 %v1122, %v1187
          %v1191 = vadd.f32 %v1123, %v1187
          %v1192 = vadd.f32 %v1124, %v1187
          %v1193 = vadd.f32 %v1125, %v1187
          %v1194 = vadd.f32 %v1126, %v1187
          %v1195 = vadd.f32 %v1127, %v1187
          %v1196 = vadd.f32 %v1128, %v1187
          %v1197 = vadd.f32 %v1129, %v1187
          %v1198 = vadd.f32 %v1130, %v1187
          %v1199 = vadd.f32 %v1131, %v1187
          %v1200 = vadd.f32 %v1132, %v1187
          %v1201 = vadd.f32 %v1133, %v1187
          %v1202 = vadd.f32 %v1134, %v1187
          %v1203 = vadd.f32 %v1135, %v1187
          %v1204 = vadd.f32 %v1136, %v1187
          %v1205 = vadd.f32 %v1137, %v1187
          %v1206 = vadd.f32 %v1138, %v1187
          %v1207 = vadd.f32 %v1139, %v1187
          %v1208 = vadd.f32 %v1140, %v1187
          %v1209 = vadd.f32 %v1141, %v1187
          %v1210 = vadd.f32 %v1142, %v1187
          %v1211 = vadd.f32 %v1143, %v1187
          %v1212 = vadd.f32 %v1144, %v1187
          %v1213 = vadd.f32 %v1145, %v1187
          %v1214 = vadd.f32 %v1146, %v1187
          %v1215 = vadd.f32 %v1147, %v1187
          %v1216 = vadd.f32 %v1148, %v1187
          %v1217 = vadd.f32 %v1149, %v1187
          %v1218 = vadd.f32 %v1150, %v1187
          %v1219 = vadd.f32 %v1151, %v1187
          %v1220 = vadd.f32 %v1152, %v1187
          %v1221 = vadd.f32 %v1153, %v1187
          %v1222 = vadd.f32 %v1154, %v1187
          %v1223 = vadd.f32 %v1155, %v1187
          %v1224 = vadd.f32 %v1156, %v1187
          %v1225 = vadd.f32 %v1157, %v1187
          %v1226 = vadd.f32 %v1158, %v1187
          %v1227 = vadd.f32 %v1159, %v1187
          %v1228 = vadd.f32 %v1160, %v1187
          %v1229 = vadd.f32 %v1161, %v1187
          %v1230 = vadd.f32 %v1162, %v1187
          %v1231 = vadd.f32 %v1163, %v1187
          %v1232 = vadd.f32 %v1164, %v1187
          %v1233 = vadd.f32 %v1165, %v1187
          %v1234 = vadd.f32 %v1166, %v1187
          %v1235 = vadd.f32 %v1167, %v1187
          %v1236 = vadd.f32 %v1168, %v1187
          %v1237 = vadd.f32 %v1169, %v1187
          %v1238 = vadd.f32 %v1170, %v1187
          %v1239 = vadd.f32 %v1171, %v1187
          %v1240 = vadd.f32 %v1172, %v1187
          %v1241 = vadd.f32 %v1173, %v1187
          %v1242 = vadd.f32 %v1174, %v1187
          %v1243 = vadd.f32 %v1175, %v1187
          %v1244 = vadd.f32 %v1176, %v1187
          %v1245 = vadd.f32 %v1177, %v1187
          %v1246 = vadd.f32 %v1178, %v1187
          %v1247 = vadd.f32 %v1179, %v1187
          %v1248 = vadd.f32 %v1180, %v1187
          %v1249 = vadd.f32 %v1181, %v1187
          %v1250 = vadd.f32 %v1182, %v1187
          %v1251 = vadd.f32 %v1183, %v1187
          %v1252 = vadd.f32 %v1184, %v1187
          %v1253 = vmax.f32 %v1189, 0.0
          %v1254 = vmax.f32 %v1190, 0.0
          %v1255 = vmax.f32 %v1191, 0.0
          %v1256 = vmax.f32 %v1192, 0.0
          %v1257 = vmax.f32 %v1193, 0.0
          %v1258 = vmax.f32 %v1194, 0.0
          %v1259 = vmax.f32 %v1195, 0.0
          %v1260 = vmax.f32 %v1196, 0.0
          %v1261 = vmax.f32 %v1197, 0.0
          %v1262 = vmax.f32 %v1198, 0.0
          %v1263 = vmax.f32 %v1199, 0.0
          %v1264 = vmax.f32 %v1200, 0.0
          %v1265 = vmax.f32 %v1201, 0.0
          %v1266 = vmax.f32 %v1202, 0.0
          %v1267 = vmax.f32 %v1203, 0.0
          %v1268 = vmax.f32 %v1204, 0.0
          %v1269 = vmax.f32 %v1205, 0.0
          %v1270 = vmax.f32 %v1206, 0.0
          %v1271 = vmax.f32 %v1207, 0.0
          %v1272 = vmax.f32 %v1208, 0.0
          %v1273 = vmax.f32 %v1209, 0.0
          %v1274 = vmax.f32 %v1210, 0.0
          %v1275 = vmax.f32 %v1211, 0.0
          %v1276 = vmax.f32 %v1212, 0.0
          %v1277 = vmax.f32 %v1213, 0.0
          %v1278 = vmax.f32 %v1214, 0.0
          %v1279 = vmax.f32 %v1215, 0.0
          %v1280 = vmax.f32 %v1216, 0.0
          %v1281 = vmax.f32 %v1217, 0.0
          %v1282 = vmax.f32 %v1218, 0.0
          %v1283 = vmax.f32 %v1219, 0.0
          %v1284 = vmax.f32 %v1220, 0.0
          %v1285 = vmax.f32 %v1221, 0.0
          %v1286 = vmax.f32 %v1222, 0.0
          %v1287 = vmax.f32 %v1223, 0.0
          %v1288 = vmax.f32 %v1224, 0.0
          %v1289 = vmax.f32 %v1225, 0.0
          %v1290 = vmax.f32 %v1226, 0.0
          %v1291 = vmax.f32 %v1227, 0.0
          %v1292 = vmax.f32 %v1228, 0.0
          %v1293 = vmax.f32 %v1229, 0.0
          %v1294 = vmax.f32 %v1230, 0.0
          %v1295 = vmax.f32 %v1231, 0.0
          %v1296 = vmax.f32 %v1232, 0.0
          %v1297 = vmax.f32 %v1233, 0.0
          %v1298 = vmax.f32 %v1234, 0.0
          %v1299 = vmax.f32 %v1235, 0.0
          %v1300 = vmax.f32 %v1236, 0.0
          %v1301 = vmax.f32 %v1237, 0.0
          %v1302 = vmax.f32 %v1238, 0.0
          %v1303 = vmax.f32 %v1239, 0.0
          %v1304 = vmax.f32 %v1240, 0.0
          %v1305 = vmax.f32 %v1241, 0.0
          %v1306 = vmax.f32 %v1242, 0.0
          %v1307 = vmax.f32 %v1243, 0.0
          %v1308 = vmax.f32 %v1244, 0.0
          %v1309 = vmax.f32 %v1245, 0.0
          %v1310 = vmax.f32 %v1246, 0.0
          %v1311 = vmax.f32 %v1247, 0.0
          %v1312 = vmax.f32 %v1248, 0.0
          %v1313 = vmax.f32 %v1249, 0.0
          %v1314 = vmax.f32 %v1250, 0.0
          %v1315 = vmax.f32 %v1251, 0.0
          %v1316 = vmax.f32 %v1252, 0.0
          %v1317 = vpack.c.bf16 %v1253, %v1253
          %v1318 = vpack.c.bf16 %v1254, %v1254
          %v1319 = vpack.c.bf16 %v1255, %v1255
          %v1320 = vpack.c.bf16 %v1256, %v1256
          %v1321 = vpack.c.bf16 %v1257, %v1257
          %v1322 = vpack.c.bf16 %v1258, %v1258
          %v1323 = vpack.c.bf16 %v1259, %v1259
          %v1324 = vpack.c.bf16 %v1260, %v1260
          %v1325 = vpack.c.bf16 %v1261, %v1261
          %v1326 = vpack.c.bf16 %v1262, %v1262
          %v1327 = vpack.c.bf16 %v1263, %v1263
          %v1328 = vpack.c.bf16 %v1264, %v1264
          %v1329 = vpack.c.bf16 %v1265, %v1265
          %v1330 = vpack.c.bf16 %v1266, %v1266
          %v1331 = vpack.c.bf16 %v1267, %v1267
          %v1332 = vpack.c.bf16 %v1268, %v1268
          %v1333 = vpack.c.bf16 %v1269, %v1269
          %v1334 = vpack.c.bf16 %v1270, %v1270
          %v1335 = vpack.c.bf16 %v1271, %v1271
          %v1336 = vpack.c.bf16 %v1272, %v1272
          %v1337 = vpack.c.bf16 %v1273, %v1273
          %v1338 = vpack.c.bf16 %v1274, %v1274
          %v1339 = vpack.c.bf16 %v1275, %v1275
          %v1340 = vpack.c.bf16 %v1276, %v1276
          %v1341 = vpack.c.bf16 %v1277, %v1277
          %v1342 = vpack.c.bf16 %v1278, %v1278
          %v1343 = vpack.c.bf16 %v1279, %v1279
          %v1344 = vpack.c.bf16 %v1280, %v1280
          %v1345 = vpack.c.bf16 %v1281, %v1281
          %v1346 = vpack.c.bf16 %v1282, %v1282
          %v1347 = vpack.c.bf16 %v1283, %v1283
          %v1348 = vpack.c.bf16 %v1284, %v1284
          %v1349 = vpack.c.bf16 %v1285, %v1285
          %v1350 = vpack.c.bf16 %v1286, %v1286
          %v1351 = vpack.c.bf16 %v1287, %v1287
          %v1352 = vpack.c.bf16 %v1288, %v1288
          %v1353 = vpack.c.bf16 %v1289, %v1289
          %v1354 = vpack.c.bf16 %v1290, %v1290
          %v1355 = vpack.c.bf16 %v1291, %v1291
          %v1356 = vpack.c.bf16 %v1292, %v1292
          %v1357 = vpack.c.bf16 %v1293, %v1293
          %v1358 = vpack.c.bf16 %v1294, %v1294
          %v1359 = vpack.c.bf16 %v1295, %v1295
          %v1360 = vpack.c.bf16 %v1296, %v1296
          %v1361 = vpack.c.bf16 %v1297, %v1297
          %v1362 = vpack.c.bf16 %v1298, %v1298
          %v1363 = vpack.c.bf16 %v1299, %v1299
          %v1364 = vpack.c.bf16 %v1300, %v1300
          %v1365 = vpack.c.bf16 %v1301, %v1301
          %v1366 = vpack.c.bf16 %v1302, %v1302
          %v1367 = vpack.c.bf16 %v1303, %v1303
          %v1368 = vpack.c.bf16 %v1304, %v1304
          %v1369 = vpack.c.bf16 %v1305, %v1305
          %v1370 = vpack.c.bf16 %v1306, %v1306
          %v1371 = vpack.c.bf16 %v1307, %v1307
          %v1372 = vpack.c.bf16 %v1308, %v1308
          %v1373 = vpack.c.bf16 %v1309, %v1309
          %v1374 = vpack.c.bf16 %v1310, %v1310
          %v1375 = vpack.c.bf16 %v1311, %v1311
          %v1376 = vpack.c.bf16 %v1312, %v1312
          %v1377 = vpack.c.bf16 %v1313, %v1313
          %v1378 = vpack.c.bf16 %v1314, %v1314
          %v1379 = vpack.c.bf16 %v1315, %v1315
          %v1380 = vpack.c.bf16 %v1316, %v1316
          %1381 = vst [vmem:[%s291] sm:$0xf] %v1317
          %1382 = vst [vmem:[%s291 + $0x4] sm:$0xf] %v1318
          %1383 = vst [vmem:[%s291 + $0x8] sm:$0xf] %v1319
          %1384 = vst [vmem:[%s291 + $0xc] sm:$0xf] %v1320
          %1385 = vst [vmem:[%s291 + $0x10] sm:$0xf] %v1321
          %1386 = vst [vmem:[%s291 + $0x14] sm:$0xf] %v1322
          %1387 = vst [vmem:[%s291 + $0x18] sm:$0xf] %v1323
          %1388 = vst [vmem:[%s291 + $0x1c] sm:$0xf] %v1324
          %1389 = vst [vmem:[%s291 + $0x20] sm:$0xf] %v1325
          %1390 = vst [vmem:[%s291 + $0x24] sm:$0xf] %v1326
          %1391 = vst [vmem:[%s291 + $0x28] sm:$0xf] %v1327
          %1392 = vst [vmem:[%s291 + $0x2c] sm:$0xf] %v1328
          %1393 = vst [vmem:[%s291 + $0x30] sm:$0xf] %v1329
          %1394 = vst [vmem:[%s291 + $0x34] sm:$0xf] %v1330
          %1395 = vst [vmem:[%s291 + $0x38] sm:$0xf] %v1331
          %1396 = vst [vmem:[%s291 + $0x3c] sm:$0xf] %v1332
          %1397 = vst [vmem:[%s291 + $0x40] sm:$0xf] %v1333
          %1398 = vst [vmem:[%s291 + $0x44] sm:$0xf] %v1334
          %1399 = vst [vmem:[%s291 + $0x48] sm:$0xf] %v1335
          %1400 = vst [vmem:[%s291 + $0x4c] sm:$0xf] %v1336
          %1401 = vst [vmem:[%s291 + $0x50] sm:$0xf] %v1337
          %1402 = vst [vmem:[%s291 + $0x54] sm:$0xf] %v1338
          %1403 = vst [vmem:[%s291 + $0x58] sm:$0xf] %v1339
          %1404 = vst [vmem:[%s291 + $0x5c] sm:$0xf] %v1340
          %1405 = vst [vmem:[%s291 + $0x60] sm:$0xf] %v1341
          %1406 = vst [vmem:[%s291 + $0x64] sm:$0xf] %v1342
          %1407 = vst [vmem:[%s291 + $0x68] sm:$0xf] %v1343
          %1408 = vst [vmem:[%s291 + $0x6c] sm:$0xf] %v1344
          %1409 = vst [vmem:[%s291 + $0x70] sm:$0xf] %v1345
          %1410 = vst [vmem:[%s291 + $0x74] sm:$0xf] %v1346
          %1411 = vst [vmem:[%s291 + $0x78] sm:$0xf] %v1347
          %1412 = vst [vmem:[%s291 + $0x7c] sm:$0xf] %v1348
          %1413 = vst [vmem:[%s291 + $0x80] sm:$0xf] %v1349
          %1414 = vst [vmem:[%s291 + $0x84] sm:$0xf] %v1350
          %1415 = vst [vmem:[%s291 + $0x88] sm:$0xf] %v1351
          %1416 = vst [vmem:[%s291 + $0x8c] sm:$0xf] %v1352
          %1417 = vst [vmem:[%s291 + $0x90] sm:$0xf] %v1353
          %1418 = vst [vmem:[%s291 + $0x94] sm:$0xf] %v1354
          %1419 = vst [vmem:[%s291 + $0x98] sm:$0xf] %v1355
          %1420 = vst [vmem:[%s291 + $0x9c] sm:$0xf] %v1356
          %1421 = vst [vmem:[%s291 + $0xa0] sm:$0xf] %v1357
          %1422 = vst [vmem:[%s291 + $0xa4] sm:$0xf] %v1358
          %1423 = vst [vmem:[%s291 + $0xa8] sm:$0xf] %v1359
          %1424 = vst [vmem:[%s291 + $0xac] sm:$0xf] %v1360
          %1425 = vst [vmem:[%s291 + $0xb0] sm:$0xf] %v1361
          %1426 = vst [vmem:[%s291 + $0xb4] sm:$0xf] %v1362
          %1427 = vst [vmem:[%s291 + $0xb8] sm:$0xf] %v1363
          %1428 = vst [vmem:[%s291 + $0xbc] sm:$0xf] %v1364
          %1429 = vst [vmem:[%s291 + $0xc0] sm:$0xf] %v1365
          %1430 = vst [vmem:[%s291 + $0xc4] sm:$0xf] %v1366
          %1431 = vst [vmem:[%s291 + $0xc8] sm:$0xf] %v1367
          %1432 = vst [vmem:[%s291 + $0xcc] sm:$0xf] %v1368
          %1433 = vst [vmem:[%s291 + $0xd0] sm:$0xf] %v1369
          %1434 = vst [vmem:[%s291 + $0xd4] sm:$0xf] %v1370
          %1435 = vst [vmem:[%s291 + $0xd8] sm:$0xf] %v1371
          %1436 = vst [vmem:[%s291 + $0xdc] sm:$0xf] %v1372
          %1437 = vst [vmem:[%s291 + $0xe0] sm:$0xf] %v1373
          %1438 = vst [vmem:[%s291 + $0xe4] sm:$0xf] %v1374
          %1439 = vst [vmem:[%s291 + $0xe8] sm:$0xf] %v1375
          %1440 = vst [vmem:[%s291 + $0xec] sm:$0xf] %v1376
          %1441 = vst [vmem:[%s291 + $0xf0] sm:$0xf] %v1377
          %1442 = vst [vmem:[%s291 + $0xf4] sm:$0xf] %v1378
          %1443 = vst [vmem:[%s291 + $0xf8] sm:$0xf] %v1379
          %1444 = vst [vmem:[%s291 + $0xfc] sm:$0xf] %v1380
        $region52: #{tpu_custom_call.1} parent=35 // pred_fallthru
          _
        %s1445 = sand.u32 %s159, 1
        %s1446 = scalar_lea.sflag [#allocation5], %s1445
        %s1447 = sand.u32 %s159, 1
        %s1448 = smul.addr %s1447, 256
        %s1449 = scalar_lea.vmem [#allocation8], %s1448
        // Predicated region
        $region53: #{tpu_custom_call.1} parent=35 // pred_check
          %p1450 = pneg %p169
        $region54: #{tpu_custom_call.1} parent=35 // pred_check_branch
          %1452 = sbr.rel (%p1450) target = $region56
        $region55: #{tpu_custom_call.1} parent=35 // pred_region
          %s1453 = smul.u32 64, %s27
          %1455 = vsyncadd %s1446, 0
          %s1456 = sadd.s32 %s28, %s1453
          %s1457 = smul.addr %s1456, 4
          %s1458 = scalar_lea.hbm %s4, %s1457
          %s1459 = sshll.u32 %s1449, 4
          %s1460 = int_to_ptr.vmem [resolvable:$true] %s1459
          %s1461 = sshll.u32 %s1458, 4
          %s1462 = int_to_ptr.hbm [resolvable:$true] %s1461
          %1467 = dma.vmem_to_hbm [thread:$0]  %s1460, 4096, %s1462, %s1446, 64, 64, 4
        $region56: #{tpu_custom_call.1} parent=35 // pred_fallthru
          _
      $region36: #{tpu_custom_call.1} parent=5 // pred_fallthru
        _
      %p1468 = scmp.le.s32.totalorder 2, %s17
      // Predicated region
      $region57: #{tpu_custom_call.1} parent=5 // pred_check
        %p1469 = pneg %p1468
      $region58: #{tpu_custom_call.1} parent=5 // pred_check_branch
        %1471 = sbr.rel (%p1469) target = $region60
      $region59: #{tpu_custom_call.1} parent=5 // pred_region
        %s1472 = ssub.s32 %s17, 2
        // Predicated region
        $region61: #{tpu_custom_call.1} parent=59 // pred_check
          %p1473 = pneg %p175
        $region62: #{tpu_custom_call.1} parent=59 // pred_check_branch
          %1475 = sbr.rel (%p1473) target = $region64
        $region63: #{tpu_custom_call.1} parent=59 // pred_region
          %s1476 = sand.u32 %s160, 1
          %s1477 = scalar_lea.sflag [#allocation5], %s1476
          %s1478 = sand.u32 %s160, 1
          %s1479 = smul.addr %s1478, 256
          %s1480 = scalar_lea.vmem [#allocation8], %s1479
          %1482 = dma.done %s1477, 4096
        $region64: #{tpu_custom_call.1} parent=59 // pred_fallthru
          _
      $region60: #{tpu_custom_call.1} parent=5 // pred_fallthru
        _
    $region6: #{tpu_custom_call.1} parent=1 // loop_footer
      %s21 = sadd.s32 1, %s17
    $region7: #{tpu_custom_call.1} parent=1 // loop_footer_branch
      %16 = sbr.rel target = $region3
    $region8: #{tpu_custom_call.1} parent=1 // loop_exit
      _
    %1483 = vsyncpa [#allocation4], 1
    %s1484 = scalar_lea.sflag [#allocation4], 1
    %1485 = vsyncpa %s1484, 1
    %1486 = vsyncpa [#allocation7], 1
    %1487 = vsyncpa [#allocation5], 1
    %s1488 = scalar_lea.sflag [#allocation5], 1
    %1489 = vsyncpa %s1488, 1

</llo_original>
